<compile_context>
chip_gen: v5e
topology: v5e:2x2
jax: 0.10.0
libtpu: 0.0.40
codegen_flags: <defaults>
</compile_context>

<pallas_src>
import functools
import math

import jax
import jax.numpy as jnp
from jax.experimental import pallas as pl
from jax.experimental.pallas import tpu as pltpu

EPS = 1e-5


# --------------------------------------------------------------------------
# Fused Pallas kernel: one batch sample per grid step, NCT layout (C, T).
# --------------------------------------------------------------------------
def _local_block_kernel(x_ref, w1_ref, b1_ref, s1_ref, t1_ref,
                        rw_ref, rb_ref,
                        w2_ref, b2_ref, s3_ref, t3_ref,
                        sw1_ref, sb1_ref, sw2_ref, sb2_ref,
                        o_ref, *, scale, kernel_size, dilation):
    _, C, T = x_ref.shape
    Wg = C // scale
    nums = scale - 1
    K = kernel_size
    pad = dilation * (K - 1) // 2

    x = x_ref[0]                                             # (C, T), time on lanes

    # proj1 (1x1 conv as MXU matmul) -> ReLU -> BN1 (folded scale/shift)
    y = jnp.dot(w1_ref[...], x, preferred_element_type=jnp.float32) + b1_ref[...]
    h1 = jnp.maximum(y, 0.0) * s1_ref[...] + t1_ref[...]

    # Res2Conv1D: hierarchical group convs along time, last split passthrough.
    # The K dilated taps of each split are stacked on sublanes -> one matmul.
    outs = []
    sp = None
    for i in range(nums):
        grp = h1[i * Wg:(i + 1) * Wg, :]
        sp = grp if i == 0 else sp + grp
        if pad > 0:
            z = jnp.zeros((Wg, pad), sp.dtype)
            padded = jnp.concatenate([z, sp, z], axis=1)     # "same" padding in time
        else:
            padded = sp
        taps = [padded[:, k * dilation:k * dilation + T] for k in range(K)]
        xs = jnp.concatenate(taps, axis=0) if K > 1 else taps[0]   # (K*Wg, T)
        sp = rb_ref[i] + jnp.dot(rw_ref[i], xs,
                                 preferred_element_type=jnp.float32)
        outs.append(sp)
    outs.append(h1[nums * Wg:, :])
    r = jnp.concatenate(outs, axis=0)                        # (C, T)

    # proj2 -> ReLU -> BN3 (folded)
    y = jnp.dot(w2_ref[...], r, preferred_element_type=jnp.float32) + b2_ref[...]
    h3 = jnp.maximum(y, 0.0) * s3_ref[...] + t3_ref[...]

    # SE gate, fused in-kernel (time-mean on the XLU; no extra HBM pass).
    m = jnp.mean(h3, axis=1, keepdims=True)                  # (C, 1)
    u = jnp.dot(sw1_ref[...], m, preferred_element_type=jnp.float32) + sb1_ref[...]
    u = jnp.maximum(u, 0.0)
    zlog = jnp.dot(sw2_ref[...], u, preferred_element_type=jnp.float32) + sb2_ref[...]
    gate = 1.0 / (1.0 + jnp.exp(-zlog))                      # (C, 1), EUP exp

    o_ref[0] = x + h3 * gate                                 # skip + SE(BN3(...))


# --------------------------------------------------------------------------
# Wrapper
# --------------------------------------------------------------------------
def _bn_affine(g, b, m, v):
    s = g / jnp.sqrt(v + EPS)
    return s, b - m * s


def local_block_forward(x, params, *, scale=4, kernel_size=3, dilation=1):
    """x: (N, C, T) float32 -> (N, C, T) float32."""
    N, C, T = x.shape
    Wg = C // scale
    nums = scale - 1
    K = kernel_size
    B = params["se_w1"].shape[0]

    s1, t1 = _bn_affine(params["bn1_g"], params["bn1_b"], params["bn1_m"], params["bn1_v"])
    s3, t3 = _bn_affine(params["bn3_g"], params["bn3_b"], params["bn3_m"], params["bn3_v"])

    col = lambda v: v.reshape(-1, 1).astype(jnp.float32)

    # Concatenate the K tap weights along the input-channel axis so each split
    # runs a single (Wg, K*Wg) @ (K*Wg, T) MXU matmul inside the kernel.
    rw = params["res_w"].transpose(0, 2, 1, 3).reshape(nums, Wg, K * Wg)
    rb = params["res_b"].reshape(nums, Wg, 1)

    def full(shape):
        # Weight/bias blocks: whole array, constant block index across the grid
        # -> Pallas keeps them resident in VMEM (no per-step re-DMA).
        return pl.BlockSpec(shape, lambda n: (0,) * len(shape))

    kern = functools.partial(_local_block_kernel, scale=scale,
                             kernel_size=K, dilation=dilation)

    flops_per_sample = (2 * C * C * T * 2                    # proj1 + proj2
                        + nums * 2 * Wg * (K * Wg) * T       # res2conv fused taps
                        + 2 * 2 * B * C                      # SE fc1 + fc2
                        + 8 * C * T)                         # elementwise
    cost = pl.CostEstimate(
        flops=N * flops_per_sample,
        transcendentals=N * C,
        bytes_accessed=(2 * N * C * T + 2 * C * C
                        + nums * Wg * K * Wg + 2 * B * C) * 4,
    )

    return pl.pallas_call(
        kern,
        out_shape=jax.ShapeDtypeStruct((N, C, T), jnp.float32),
        grid=(N,),
        in_specs=[
            pl.BlockSpec((1, C, T), lambda n: (n, 0, 0)),               # x (also skip)
            full((C, C)), full((C, 1)), full((C, 1)), full((C, 1)),     # w1, b1, s1, t1
            full((nums, Wg, K * Wg)), full((nums, Wg, 1)),              # res2 weights/bias
            full((C, C)), full((C, 1)), full((C, 1)), full((C, 1)),     # w2, b2, s3, t3
            full((B, C)), full((B, 1)), full((C, B)), full((C, 1)),     # SE fc1/fc2
        ],
        out_specs=pl.BlockSpec((1, C, T), lambda n: (n, 0, 0)),
        compiler_params=pltpu.CompilerParams(
            dimension_semantics=("parallel",),
            vmem_limit_bytes=32 * 1024 * 1024,               # v7x-safe scoped budget
        ),
        cost_estimate=cost,
    )(x.astype(jnp.float32),
      params["w1"], col(params["b1"]), col(s1), col(t1),
      rw, rb,
      params["w2"], col(params["b2"]), col(s3), col(t3),
      params["se_w1"], col(params["se_b1"]), params["se_w2"], col(params["se_b2"]))


# --------------------------------------------------------------------------
# Parameter init (matches PyTorch module structure; norm2 unused in forward)
# --------------------------------------------------------------------------
def init_params(key, dim, *, scale=4, kernel_size=3, se_bottleneck=None):
    if se_bottleneck is None:
        se_bottleneck = max(dim // 4, 8)
    Wg = dim // scale
    nums = scale - 1
    ks = jax.random.split(key, 18)

    def u(k, shape, lo, hi):
        return jax.random.uniform(k, shape, jnp.float32, lo, hi)

    fan = 1.0 / math.sqrt(dim)
    fang = 1.0 / math.sqrt(Wg * kernel_size)
    fanb = 1.0 / math.sqrt(se_bottleneck)
    p = {
        "w1": u(ks[0], (dim, dim), -fan, fan),            # Conv1d(dim, dim, 1)
        "b1": u(ks[1], (dim,), -fan, fan),
        "w2": u(ks[2], (dim, dim), -fan, fan),
        "b2": u(ks[3], (dim,), -fan, fan),
        "res_w": u(ks[4], (nums, kernel_size, Wg, Wg), -fang, fang),
        "res_b": u(ks[5], (nums, Wg), -fang, fang),
        "se_w1": u(ks[6], (se_bottleneck, dim), -fan, fan),
        "se_b1": u(ks[7], (se_bottleneck,), -fan, fan),
        "se_w2": u(ks[8], (dim, se_bottleneck), -fanb, fanb),
        "se_b2": u(ks[9], (dim,), -fanb, fanb),
    }
    for name, (kg, kb, km, kv) in (("bn1", (ks[10], ks[11], ks[12], ks[13])),
                                   ("bn3", (ks[14], ks[15], ks[16], ks[17]))):
        p[f"{name}_g"] = u(kg, (dim,), 0.5, 1.5)
        p[f"{name}_b"] = u(kb, (dim,), -0.1, 0.1)
        p[f"{name}_m"] = u(km, (dim,), -0.1, 0.1)
        p[f"{name}_v"] = u(kv, (dim,), 0.5, 1.5)
    return p


# --------------------------------------------------------------------------
# Pure-JAX reference (same math, no Pallas) for a sanity check
# --------------------------------------------------------------------------
def _ref_forward(x, params, *, scale=4, kernel_size=3, dilation=1):
    N, C, T = x.shape
    Wg = C // scale
    nums = scale - 1
    K = kernel_size
    pad = dilation * (K - 1) // 2

    def bn(v, name):
        s = params[f"{name}_g"] / jnp.sqrt(params[f"{name}_v"] + EPS)
        t = params[f"{name}_b"] - params[f"{name}_m"] * s
        return v * s[None, :, None] + t[None, :, None]

    y = jnp.einsum("oc,nct->not", params["w1"], x) + params["b1"][None, :, None]
    h1 = bn(jnp.maximum(y, 0.0), "bn1")

    outs = []
    sp = None
    for i in range(nums):
        grp = h1[:, i * Wg:(i + 1) * Wg, :]
        sp = grp if i == 0 else sp + grp
        padded = jnp.pad(sp, ((0, 0), (0, 0), (pad, pad)))
        y_i = params["res_b"][i][None, :, None]
        for k in range(K):
            off = k * dilation
            y_i = y_i + jnp.einsum("oi,nit->not", params["res_w"][i, k],
                                   padded[:, :, off:off + T])
        sp = y_i
        outs.append(y_i)
    outs.append(h1[:, nums * Wg:, :])
    r = jnp.concatenate(outs, axis=1)

    y = jnp.einsum("oc,nct->not", params["w2"], r) + params["b2"][None, :, None]
    h3 = bn(jnp.maximum(y, 0.0), "bn3")

    m = jnp.mean(h3, axis=2, keepdims=True)
    u = jnp.maximum(jnp.einsum("bc,ncx->nbx", params["se_w1"], m)
                    + params["se_b1"][None, :, None], 0.0)
    gate = jax.nn.sigmoid(jnp.einsum("cb,nbx->ncx", params["se_w2"], u)
                          + params["se_b2"][None, :, None])
    return x + h3 * gate


# --------------------------------------------------------------------------
if __name__ == "__main__":
    N, C, T = 2, 64, 16
    scale, kernel_size, dilation = 4, 3, 1

    key = jax.random.PRNGKey(0)
    kx, kp = jax.random.split(key)
    x = jax.random.normal(kx, (N, C, T), jnp.float32)
    params = init_params(kp, C, scale=scale, kernel_size=kernel_size)

    out = jax.block_until_ready(
        local_block_forward(x, params, scale=scale, kernel_size=kernel_size,
                            dilation=dilation))
    ref = jax.block_until_ready(
        _ref_forward(x, params, scale=scale, kernel_size=kernel_size,
                     dilation=dilation))

    assert out.shape == (N, C, T)
    assert bool(jnp.all(jnp.isfinite(out)))
    assert bool(jnp.allclose(out, ref, atol=2e-2, rtol=2e-2)), "mismatch vs JAX reference"
    print("KERNEL_OK")
</pallas_src>

<mosaic_0001>
module attributes {stable_mosaic.version = 11 : i64} {
  func.func @_local_block_kernel(%arg0: i32, %arg1: memref<1x64x16xf32, #tpu.memory_space<vmem>>, %arg2: memref<64x64xf32, #tpu.memory_space<vmem>>, %arg3: memref<64x1xf32, #tpu.memory_space<vmem>>, %arg4: memref<64x1xf32, #tpu.memory_space<vmem>>, %arg5: memref<64x1xf32, #tpu.memory_space<vmem>>, %arg6: memref<3x16x48xf32, #tpu.memory_space<vmem>>, %arg7: memref<3x16x1xf32, #tpu.memory_space<vmem>>, %arg8: memref<64x64xf32, #tpu.memory_space<vmem>>, %arg9: memref<64x1xf32, #tpu.memory_space<vmem>>, %arg10: memref<64x1xf32, #tpu.memory_space<vmem>>, %arg11: memref<64x1xf32, #tpu.memory_space<vmem>>, %arg12: memref<16x64xf32, #tpu.memory_space<vmem>>, %arg13: memref<16x1xf32, #tpu.memory_space<vmem>>, %arg14: memref<64x16xf32, #tpu.memory_space<vmem>>, %arg15: memref<64x1xf32, #tpu.memory_space<vmem>>, %arg16: memref<1x64x16xf32, #tpu.memory_space<vmem>>) attributes {dimension_semantics = [#tpu.dimension_semantics<parallel>], iteration_bounds = array<i64: 2>, scalar_prefetch = 0 : i64, scratch_operands = 0 : i64, tpu.core_type = #tpu.core_type<tc>, window_params = [{transform_indices = @transform_0, window_bounds = array<i64: 1, 64, 16>}, {pipeline_mode = #tpu.pipeline_mode<synchronous>, transform_indices = @transform_1, window_bounds = array<i64: 64, 64>}, {pipeline_mode = #tpu.pipeline_mode<synchronous>, transform_indices = @transform_2, window_bounds = array<i64: 64, 1>}, {pipeline_mode = #tpu.pipeline_mode<synchronous>, transform_indices = @transform_3, window_bounds = array<i64: 64, 1>}, {pipeline_mode = #tpu.pipeline_mode<synchronous>, transform_indices = @transform_4, window_bounds = array<i64: 64, 1>}, {pipeline_mode = #tpu.pipeline_mode<synchronous>, transform_indices = @transform_5, window_bounds = array<i64: 3, 16, 48>}, {pipeline_mode = #tpu.pipeline_mode<synchronous>, transform_indices = @transform_6, window_bounds = array<i64: 3, 16, 1>}, {pipeline_mode = #tpu.pipeline_mode<synchronous>, transform_indices = @transform_7, window_bounds = array<i64: 64, 64>}, {pipeline_mode = #tpu.pipeline_mode<synchronous>, transform_indices = @transform_8, window_bounds = array<i64: 64, 1>}, {pipeline_mode = #tpu.pipeline_mode<synchronous>, transform_indices = @transform_9, window_bounds = array<i64: 64, 1>}, {pipeline_mode = #tpu.pipeline_mode<synchronous>, transform_indices = @transform_10, window_bounds = array<i64: 64, 1>}, {pipeline_mode = #tpu.pipeline_mode<synchronous>, transform_indices = @transform_11, window_bounds = array<i64: 16, 64>}, {pipeline_mode = #tpu.pipeline_mode<synchronous>, transform_indices = @transform_12, window_bounds = array<i64: 16, 1>}, {pipeline_mode = #tpu.pipeline_mode<synchronous>, transform_indices = @transform_13, window_bounds = array<i64: 64, 16>}, {pipeline_mode = #tpu.pipeline_mode<synchronous>, transform_indices = @transform_14, window_bounds = array<i64: 64, 1>}, {transform_indices = @transform_15, window_bounds = array<i64: 1, 64, 16>}]} {
    %c0 = arith.constant 0 : index
    %c0_0 = arith.constant 0 : index
    %c0_1 = arith.constant 0 : index
    %0 = vector.load %arg1[%c0, %c0_0, %c0_1] : memref<1x64x16xf32, #tpu.memory_space<vmem>>, vector<1x64x16xf32>
    %1 = vector.shape_cast %0 : vector<1x64x16xf32> to vector<64x16xf32>
    %c0_2 = arith.constant 0 : index
    %c0_3 = arith.constant 0 : index
    %2 = vector.load %arg2[%c0_2, %c0_3] : memref<64x64xf32, #tpu.memory_space<vmem>>, vector<64x64xf32>
    %cst = arith.constant dense<0.000000e+00> : vector<64x16xf32>
    %3 = tpu.matmul %2, %1, %cst {dimension_numbers = #tpu.dot_dimension_numbers<[1], [0], [0], [1], [0, 0, 1, 1], [], []>} : vector<64x64xf32>, vector<64x16xf32>, vector<64x16xf32> -> vector<64x16xf32>
    %c0_4 = arith.constant 0 : index
    %c0_5 = arith.constant 0 : index
    %4 = vector.load %arg3[%c0_4, %c0_5] : memref<64x1xf32, #tpu.memory_space<vmem>>, vector<64x1xf32>
    %5 = vector.broadcast %4 : vector<64x1xf32> to vector<64x16xf32>
    %6 = arith.addf %3, %5 : vector<64x16xf32>
    %cst_6 = arith.constant 0.000000e+00 : f32
    %7 = vector.broadcast %cst_6 : f32 to vector<64x16xf32>
    %8 = arith.maximumf %6, %7 : vector<64x16xf32>
    %c0_7 = arith.constant 0 : index
    %c0_8 = arith.constant 0 : index
    %9 = vector.load %arg4[%c0_7, %c0_8] : memref<64x1xf32, #tpu.memory_space<vmem>>, vector<64x1xf32>
    %10 = vector.broadcast %9 : vector<64x1xf32> to vector<64x16xf32>
    %11 = arith.mulf %8, %10 : vector<64x16xf32>
    %c0_9 = arith.constant 0 : index
    %c0_10 = arith.constant 0 : index
    %12 = vector.load %arg5[%c0_9, %c0_10] : memref<64x1xf32, #tpu.memory_space<vmem>>, vector<64x1xf32>
    %13 = vector.broadcast %12 : vector<64x1xf32> to vector<64x16xf32>
    %14 = arith.addf %11, %13 : vector<64x16xf32>
    %15 = vector.extract_strided_slice %14 {offsets = [0, 0], sizes = [16, 16], strides = [1, 1]} : vector<64x16xf32> to vector<16x16xf32>
    %cst_11 = arith.constant 0.000000e+00 : f32
    %16 = vector.broadcast %cst_11 : f32 to vector<16x1xf32>
    %17 = tpu.concatenate %16, %15, %16 in 1 : vector<16x1xf32>, vector<16x16xf32>, vector<16x1xf32> -> vector<16x18xf32>
    %18 = vector.extract_strided_slice %17 {offsets = [0, 0], sizes = [16, 16], strides = [1, 1]} : vector<16x18xf32> to vector<16x16xf32>
    %19 = vector.extract_strided_slice %17 {offsets = [0, 1], sizes = [16, 16], strides = [1, 1]} : vector<16x18xf32> to vector<16x16xf32>
    %20 = vector.extract_strided_slice %17 {offsets = [0, 2], sizes = [16, 16], strides = [1, 1]} : vector<16x18xf32> to vector<16x16xf32>
    %21 = tpu.concatenate %18, %19, %20 in 0 : vector<16x16xf32>, vector<16x16xf32>, vector<16x16xf32> -> vector<48x16xf32>
    %c0_12 = arith.constant 0 : index
    %c0_13 = arith.constant 0 : index
    %c0_14 = arith.constant 0 : index
    %22 = vector.load %arg7[%c0_12, %c0_13, %c0_14] : memref<3x16x1xf32, #tpu.memory_space<vmem>>, vector<1x16x1xf32>
    %23 = vector.shape_cast %22 : vector<1x16x1xf32> to vector<16x1xf32>
    %c0_15 = arith.constant 0 : index
    %c0_16 = arith.constant 0 : index
    %c0_17 = arith.constant 0 : index
    %24 = vector.load %arg6[%c0_15, %c0_16, %c0_17] : memref<3x16x48xf32, #tpu.memory_space<vmem>>, vector<1x16x48xf32>
    %25 = vector.shape_cast %24 : vector<1x16x48xf32> to vector<16x48xf32>
    %cst_18 = arith.constant dense<0.000000e+00> : vector<16x16xf32>
    %26 = tpu.matmul %25, %21, %cst_18 {dimension_numbers = #tpu.dot_dimension_numbers<[1], [0], [0], [1], [0, 0, 1, 1], [], []>} : vector<16x48xf32>, vector<48x16xf32>, vector<16x16xf32> -> vector<16x16xf32>
    %27 = vector.broadcast %23 : vector<16x1xf32> to vector<16x16xf32>
    %28 = arith.addf %27, %26 : vector<16x16xf32>
    %29 = vector.extract_strided_slice %14 {offsets = [16, 0], sizes = [16, 16], strides = [1, 1]} : vector<64x16xf32> to vector<16x16xf32>
    %30 = arith.addf %28, %29 : vector<16x16xf32>
    %cst_19 = arith.constant 0.000000e+00 : f32
    %31 = vector.broadcast %cst_19 : f32 to vector<16x1xf32>
    %32 = tpu.concatenate %31, %30, %31 in 1 : vector<16x1xf32>, vector<16x16xf32>, vector<16x1xf32> -> vector<16x18xf32>
    %33 = vector.extract_strided_slice %32 {offsets = [0, 0], sizes = [16, 16], strides = [1, 1]} : vector<16x18xf32> to vector<16x16xf32>
    %34 = vector.extract_strided_slice %32 {offsets = [0, 1], sizes = [16, 16], strides = [1, 1]} : vector<16x18xf32> to vector<16x16xf32>
    %35 = vector.extract_strided_slice %32 {offsets = [0, 2], sizes = [16, 16], strides = [1, 1]} : vector<16x18xf32> to vector<16x16xf32>
    %36 = tpu.concatenate %33, %34, %35 in 0 : vector<16x16xf32>, vector<16x16xf32>, vector<16x16xf32> -> vector<48x16xf32>
    %c1 = arith.constant 1 : index
    %c0_20 = arith.constant 0 : index
    %c0_21 = arith.constant 0 : index
    %37 = vector.load %arg7[%c1, %c0_20, %c0_21] : memref<3x16x1xf32, #tpu.memory_space<vmem>>, vector<1x16x1xf32>
    %38 = vector.shape_cast %37 : vector<1x16x1xf32> to vector<16x1xf32>
    %c1_22 = arith.constant 1 : index
    %c0_23 = arith.constant 0 : index
    %c0_24 = arith.constant 0 : index
    %39 = vector.load %arg6[%c1_22, %c0_23, %c0_24] : memref<3x16x48xf32, #tpu.memory_space<vmem>>, vector<1x16x48xf32>
    %40 = vector.shape_cast %39 : vector<1x16x48xf32> to vector<16x48xf32>
    %cst_25 = arith.constant dense<0.000000e+00> : vector<16x16xf32>
    %41 = tpu.matmul %40, %36, %cst_25 {dimension_numbers = #tpu.dot_dimension_numbers<[1], [0], [0], [1], [0, 0, 1, 1], [], []>} : vector<16x48xf32>, vector<48x16xf32>, vector<16x16xf32> -> vector<16x16xf32>
    %42 = vector.broadcast %38 : vector<16x1xf32> to vector<16x16xf32>
    %43 = arith.addf %42, %41 : vector<16x16xf32>
    %44 = vector.extract_strided_slice %14 {offsets = [32, 0], sizes = [16, 16], strides = [1, 1]} : vector<64x16xf32> to vector<16x16xf32>
    %45 = arith.addf %43, %44 : vector<16x16xf32>
    %cst_26 = arith.constant 0.000000e+00 : f32
    %46 = vector.broadcast %cst_26 : f32 to vector<16x1xf32>
    %47 = tpu.concatenate %46, %45, %46 in 1 : vector<16x1xf32>, vector<16x16xf32>, vector<16x1xf32> -> vector<16x18xf32>
    %48 = vector.extract_strided_slice %47 {offsets = [0, 0], sizes = [16, 16], strides = [1, 1]} : vector<16x18xf32> to vector<16x16xf32>
    %49 = vector.extract_strided_slice %47 {offsets = [0, 1], sizes = [16, 16], strides = [1, 1]} : vector<16x18xf32> to vector<16x16xf32>
    %50 = vector.extract_strided_slice %47 {offsets = [0, 2], sizes = [16, 16], strides = [1, 1]} : vector<16x18xf32> to vector<16x16xf32>
    %51 = tpu.concatenate %48, %49, %50 in 0 : vector<16x16xf32>, vector<16x16xf32>, vector<16x16xf32> -> vector<48x16xf32>
    %c2 = arith.constant 2 : index
    %c0_27 = arith.constant 0 : index
    %c0_28 = arith.constant 0 : index
    %52 = vector.load %arg7[%c2, %c0_27, %c0_28] : memref<3x16x1xf32, #tpu.memory_space<vmem>>, vector<1x16x1xf32>
    %53 = vector.shape_cast %52 : vector<1x16x1xf32> to vector<16x1xf32>
    %c2_29 = arith.constant 2 : index
    %c0_30 = arith.constant 0 : index
    %c0_31 = arith.constant 0 : index
    %54 = vector.load %arg6[%c2_29, %c0_30, %c0_31] : memref<3x16x48xf32, #tpu.memory_space<vmem>>, vector<1x16x48xf32>
    %55 = vector.shape_cast %54 : vector<1x16x48xf32> to vector<16x48xf32>
    %cst_32 = arith.constant dense<0.000000e+00> : vector<16x16xf32>
    %56 = tpu.matmul %55, %51, %cst_32 {dimension_numbers = #tpu.dot_dimension_numbers<[1], [0], [0], [1], [0, 0, 1, 1], [], []>} : vector<16x48xf32>, vector<48x16xf32>, vector<16x16xf32> -> vector<16x16xf32>
    %57 = vector.broadcast %53 : vector<16x1xf32> to vector<16x16xf32>
    %58 = arith.addf %57, %56 : vector<16x16xf32>
    %59 = vector.extract_strided_slice %14 {offsets = [48, 0], sizes = [16, 16], strides = [1, 1]} : vector<64x16xf32> to vector<16x16xf32>
    %60 = tpu.concatenate %28, %43, %58, %59 in 0 : vector<16x16xf32>, vector<16x16xf32>, vector<16x16xf32>, vector<16x16xf32> -> vector<64x16xf32>
    %c0_33 = arith.constant 0 : index
    %c0_34 = arith.constant 0 : index
    %61 = vector.load %arg8[%c0_33, %c0_34] : memref<64x64xf32, #tpu.memory_space<vmem>>, vector<64x64xf32>
    %cst_35 = arith.constant dense<0.000000e+00> : vector<64x16xf32>
    %62 = tpu.matmul %61, %60, %cst_35 {dimension_numbers = #tpu.dot_dimension_numbers<[1], [0], [0], [1], [0, 0, 1, 1], [], []>} : vector<64x64xf32>, vector<64x16xf32>, vector<64x16xf32> -> vector<64x16xf32>
    %c0_36 = arith.constant 0 : index
    %c0_37 = arith.constant 0 : index
    %63 = vector.load %arg9[%c0_36, %c0_37] : memref<64x1xf32, #tpu.memory_space<vmem>>, vector<64x1xf32>
    %64 = vector.broadcast %63 : vector<64x1xf32> to vector<64x16xf32>
    %65 = arith.addf %62, %64 : vector<64x16xf32>
    %cst_38 = arith.constant 0.000000e+00 : f32
    %66 = vector.broadcast %cst_38 : f32 to vector<64x16xf32>
    %67 = arith.maximumf %65, %66 : vector<64x16xf32>
    %c0_39 = arith.constant 0 : index
    %c0_40 = arith.constant 0 : index
    %68 = vector.load %arg10[%c0_39, %c0_40] : memref<64x1xf32, #tpu.memory_space<vmem>>, vector<64x1xf32>
    %69 = vector.broadcast %68 : vector<64x1xf32> to vector<64x16xf32>
    %70 = arith.mulf %67, %69 : vector<64x16xf32>
    %c0_41 = arith.constant 0 : index
    %c0_42 = arith.constant 0 : index
    %71 = vector.load %arg11[%c0_41, %c0_42] : memref<64x1xf32, #tpu.memory_space<vmem>>, vector<64x1xf32>
    %72 = vector.broadcast %71 : vector<64x1xf32> to vector<64x16xf32>
    %73 = arith.addf %70, %72 : vector<64x16xf32>
    %cst_43 = arith.constant dense<0.000000e+00> : vector<64xf32>
    %74 = vector.multi_reduction <add>, %73, %cst_43 [1] : vector<64x16xf32> to vector<64xf32>
    %75 = vector.shape_cast %74 : vector<64xf32> to vector<64x1xf32>
    %cst_44 = arith.constant 1.600000e+01 : f32
    %76 = vector.broadcast %cst_44 : f32 to vector<64x1xf32>
    %77 = arith.divf %75, %76 : vector<64x1xf32>
    %c0_45 = arith.constant 0 : index
    %c0_46 = arith.constant 0 : index
    %78 = vector.load %arg12[%c0_45, %c0_46] : memref<16x64xf32, #tpu.memory_space<vmem>>, vector<16x64xf32>
    %cst_47 = arith.constant dense<0.000000e+00> : vector<16x1xf32>
    %79 = tpu.matmul %78, %77, %cst_47 {dimension_numbers = #tpu.dot_dimension_numbers<[1], [0], [0], [1], [0, 0, 1, 1], [], []>} : vector<16x64xf32>, vector<64x1xf32>, vector<16x1xf32> -> vector<16x1xf32>
    %c0_48 = arith.constant 0 : index
    %c0_49 = arith.constant 0 : index
    %80 = vector.load %arg13[%c0_48, %c0_49] : memref<16x1xf32, #tpu.memory_space<vmem>>, vector<16x1xf32>
    %81 = arith.addf %79, %80 : vector<16x1xf32>
    %cst_50 = arith.constant 0.000000e+00 : f32
    %82 = vector.broadcast %cst_50 : f32 to vector<16x1xf32>
    %83 = arith.maximumf %81, %82 : vector<16x1xf32>
    %c0_51 = arith.constant 0 : index
    %c0_52 = arith.constant 0 : index
    %84 = vector.load %arg14[%c0_51, %c0_52] : memref<64x16xf32, #tpu.memory_space<vmem>>, vector<64x16xf32>
    %cst_53 = arith.constant dense<0.000000e+00> : vector<64x1xf32>
    %85 = tpu.matmul %84, %83, %cst_53 {dimension_numbers = #tpu.dot_dimension_numbers<[1], [0], [0], [1], [0, 0, 1, 1], [], []>} : vector<64x16xf32>, vector<16x1xf32>, vector<64x1xf32> -> vector<64x1xf32>
    %c0_54 = arith.constant 0 : index
    %c0_55 = arith.constant 0 : index
    %86 = vector.load %arg15[%c0_54, %c0_55] : memref<64x1xf32, #tpu.memory_space<vmem>>, vector<64x1xf32>
    %87 = arith.addf %85, %86 : vector<64x1xf32>
    %cst_56 = arith.constant 0.000000e+00 : f32
    %88 = vector.broadcast %cst_56 : f32 to vector<64x1xf32>
    %89 = arith.subf %88, %87 : vector<64x1xf32>
    %90 = math.exp %89 : vector<64x1xf32>
    %cst_57 = arith.constant 1.000000e+00 : f32
    %91 = vector.broadcast %cst_57 : f32 to vector<64x1xf32>
    %92 = arith.addf %91, %90 : vector<64x1xf32>
    %cst_58 = arith.constant 1.000000e+00 : f32
    %93 = vector.broadcast %cst_58 : f32 to vector<64x1xf32>
    %94 = arith.divf %93, %92 : vector<64x1xf32>
    %95 = vector.broadcast %94 : vector<64x1xf32> to vector<64x16xf32>
    %96 = arith.mulf %73, %95 : vector<64x16xf32>
    %97 = arith.addf %1, %96 : vector<64x16xf32>
    %c0_59 = arith.constant 0 : index
    %c0_60 = arith.constant 0 : index
    %c0_61 = arith.constant 0 : index
    %98 = vector.load %arg16[%c0_59, %c0_60, %c0_61] : memref<1x64x16xf32, #tpu.memory_space<vmem>>, vector<1x64x16xf32>
    %99 = vector.shape_cast %98 : vector<1x64x16xf32> to vector<64x16xf32>
    %100 = vector.shape_cast %97 : vector<64x16xf32> to vector<1x64x16xf32>
    tpu.vector_store %arg16[%c0_59, %c0_60, %c0_61], %100 {strides = array<i32>} : memref<1x64x16xf32, #tpu.memory_space<vmem>>, vector<1x64x16xf32>,
    return
  }
  func.func @transform_0(%arg0: i32) -> (i32, i32, i32) {
    %c0_i32 = arith.constant 0 : i32
    %c0_i32_0 = arith.constant 0 : i32
    %c0_i32_1 = arith.constant 0 : i32
    return %arg0, %c0_i32, %c0_i32_0 : i32, i32, i32
  }
  func.func @transform_1(%arg0: i32) -> (i32, i32) {
    %c0_i32 = arith.constant 0 : i32
    %c0_i32_0 = arith.constant 0 : i32
    %c0_i32_1 = arith.constant 0 : i32
    return %c0_i32, %c0_i32_0 : i32, i32
  }
  func.func @transform_2(%arg0: i32) -> (i32, i32) {
    %c0_i32 = arith.constant 0 : i32
    %c0_i32_0 = arith.constant 0 : i32
    %c0_i32_1 = arith.constant 0 : i32
    return %c0_i32, %c0_i32_0 : i32, i32
  }
  func.func @transform_3(%arg0: i32) -> (i32, i32) {
    %c0_i32 = arith.constant 0 : i32
    %c0_i32_0 = arith.constant 0 : i32
    %c0_i32_1 = arith.constant 0 : i32
    return %c0_i32, %c0_i32_0 : i32, i32
  }
  func.func @transform_4(%arg0: i32) -> (i32, i32) {
    %c0_i32 = arith.constant 0 : i32
    %c0_i32_0 = arith.constant 0 : i32
    %c0_i32_1 = arith.constant 0 : i32
    return %c0_i32, %c0_i32_0 : i32, i32
  }
  func.func @transform_5(%arg0: i32) -> (i32, i32, i32) {
    %c0_i32 = arith.constant 0 : i32
    %c0_i32_0 = arith.constant 0 : i32
    %c0_i32_1 = arith.constant 0 : i32
    %c0_i32_2 = arith.constant 0 : i32
    return %c0_i32, %c0_i32_0, %c0_i32_1 : i32, i32, i32
  }
  func.func @transform_6(%arg0: i32) -> (i32, i32, i32) {
    %c0_i32 = arith.constant 0 : i32
    %c0_i32_0 = arith.constant 0 : i32
    %c0_i32_1 = arith.constant 0 : i32
    %c0_i32_2 = arith.constant 0 : i32
    return %c0_i32, %c0_i32_0, %c0_i32_1 : i32, i32, i32
  }
  func.func @transform_7(%arg0: i32) -> (i32, i32) {
    %c0_i32 = arith.constant 0 : i32
    %c0_i32_0 = arith.constant 0 : i32
    %c0_i32_1 = arith.constant 0 : i32
    return %c0_i32, %c0_i32_0 : i32, i32
  }
  func.func @transform_8(%arg0: i32) -> (i32, i32) {
    %c0_i32 = arith.constant 0 : i32
    %c0_i32_0 = arith.constant 0 : i32
    %c0_i32_1 = arith.constant 0 : i32
    return %c0_i32, %c0_i32_0 : i32, i32
  }
  func.func @transform_9(%arg0: i32) -> (i32, i32) {
    %c0_i32 = arith.constant 0 : i32
    %c0_i32_0 = arith.constant 0 : i32
    %c0_i32_1 = arith.constant 0 : i32
    return %c0_i32, %c0_i32_0 : i32, i32
  }
  func.func @transform_10(%arg0: i32) -> (i32, i32) {
    %c0_i32 = arith.constant 0 : i32
    %c0_i32_0 = arith.constant 0 : i32
    %c0_i32_1 = arith.constant 0 : i32
    return %c0_i32, %c0_i32_0 : i32, i32
  }
  func.func @transform_11(%arg0: i32) -> (i32, i32) {
    %c0_i32 = arith.constant 0 : i32
    %c0_i32_0 = arith.constant 0 : i32
    %c0_i32_1 = arith.constant 0 : i32
    return %c0_i32, %c0_i32_0 : i32, i32
  }
  func.func @transform_12(%arg0: i32) -> (i32, i32) {
    %c0_i32 = arith.constant 0 : i32
    %c0_i32_0 = arith.constant 0 : i32
    %c0_i32_1 = arith.constant 0 : i32
    return %c0_i32, %c0_i32_0 : i32, i32
  }
  func.func @transform_13(%arg0: i32) -> (i32, i32) {
    %c0_i32 = arith.constant 0 : i32
    %c0_i32_0 = arith.constant 0 : i32
    %c0_i32_1 = arith.constant 0 : i32
    return %c0_i32, %c0_i32_0 : i32, i32
  }
  func.func @transform_14(%arg0: i32) -> (i32, i32) {
    %c0_i32 = arith.constant 0 : i32
    %c0_i32_0 = arith.constant 0 : i32
    %c0_i32_1 = arith.constant 0 : i32
    return %c0_i32, %c0_i32_0 : i32, i32
  }
  func.func @transform_15(%arg0: i32) -> (i32, i32, i32) {
    %c0_i32 = arith.constant 0 : i32
    %c0_i32_0 = arith.constant 0 : i32
    %c0_i32_1 = arith.constant 0 : i32
    return %arg0, %c0_i32, %c0_i32_0 : i32, i32, i32
  }
}

</mosaic_0001>

<llo_original>
// kernel: tpu_custom_call.1
$region0: #{tpu_custom_call.1}
  #allocation0 [shape = 'u32[]', space=smem, size = 0x4, offset = 0x4, fixed_abs, tag = 'smem constant byte address 0x4 - core index']
  #allocation1 [shape = 'u32[72,128]{1,0:T(1,128)}', space=vmem, size = 0x9000, scoped, tag = 'internal scratch']
  %s0 = inlined_call_operand.vmem [shape: f32[2,64,16], index: 0, kind: input, shape index: {}]
  %s1 = inlined_call_operand.vmem [shape: f32[64,64], index: 1, kind: input, shape index: {}]
  %s2 = inlined_call_operand.vmem [shape: f32[64,1], index: 2, kind: input, shape index: {}]
  %s3 = inlined_call_operand.vmem [shape: f32[64,1], index: 3, kind: input, shape index: {}]
  %s4 = inlined_call_operand.vmem [shape: f32[64,1], index: 4, kind: input, shape index: {}]
  %s5 = inlined_call_operand.vmem [shape: f32[3,16,48], index: 5, kind: input, shape index: {}]
  %s6 = inlined_call_operand.vmem [shape: f32[3,16,1], index: 6, kind: input, shape index: {}]
  %s7 = inlined_call_operand.vmem [shape: f32[64,64], index: 7, kind: input, shape index: {}]
  %s8 = inlined_call_operand.vmem [shape: f32[64,1], index: 8, kind: input, shape index: {}]
  %s9 = inlined_call_operand.vmem [shape: f32[64,1], index: 9, kind: input, shape index: {}]
  %s10 = inlined_call_operand.vmem [shape: f32[64,1], index: 10, kind: input, shape index: {}]
  %s11 = inlined_call_operand.vmem [shape: f32[16,64], index: 11, kind: input, shape index: {}]
  %s12 = inlined_call_operand.vmem [shape: f32[16,1], index: 12, kind: input, shape index: {}]
  %s13 = inlined_call_operand.vmem [shape: f32[64,16], index: 13, kind: input, shape index: {}]
  %s14 = inlined_call_operand.vmem [shape: f32[64,1], index: 14, kind: input, shape index: {}]
  %s15 = inlined_call_operand.vmem [shape: f32[2,64,16], index: 15, kind: output, shape index: {}]
  %s16 = sld [smem:[#allocation0]]
  $region93: #{tpu_custom_call.1} parent=0
    _
  %s18 = ssub.s32 1, %s16
  %s19 = scalar_select 0, %s18, %s16
  loop: start=0, step=1, limit=4
  $region2: #{tpu_custom_call.1} parent=0 // loop_pre_header
    _
  $region3: #{tpu_custom_call.1} parent=0 // loop_header
    %s21 = sphi 0, %s25
    %p22 = scmp.ge.s32.totalorder %s21, 4
    %s31 = sphi 0, %s33
    %s34 = sphi 0, %s31
    %s35 = sphi 0, %s34
    %s51 = sphi 0, %s35
    %s55 = sphi 0, %s55
    %s57 = sphi 0, %s55
    %s58 = sphi 0, %s57
    %s72 = sphi 0, %s58
    %s76 = sphi 0, %s76
    %s78 = sphi 0, %s76
    %s79 = sphi 0, %s78
    %s93 = sphi 0, %s79
    %s97 = sphi 0, %s97
    %s99 = sphi 0, %s97
    %s100 = sphi 0, %s99
    %s114 = sphi 0, %s100
    %s118 = sphi 0, %s118
    %s120 = sphi 0, %s118
    %s121 = sphi 0, %s120
    %s135 = sphi 0, %s121
    %s139 = sphi 0, %s139
    %s141 = sphi 0, %s139
    %s142 = sphi 0, %s141
    %s156 = sphi 0, %s142
    %s160 = sphi 0, %s160
    %s162 = sphi 0, %s160
    %s163 = sphi 0, %s162
    %s177 = sphi 0, %s163
    %s181 = sphi 0, %s181
    %s183 = sphi 0, %s181
    %s184 = sphi 0, %s183
    %s198 = sphi 0, %s184
    %s202 = sphi 0, %s202
    %s204 = sphi 0, %s202
    %s205 = sphi 0, %s204
    %s219 = sphi 0, %s205
    %s223 = sphi 0, %s223
    %s225 = sphi 0, %s223
    %s226 = sphi 0, %s225
    %s240 = sphi 0, %s226
    %s244 = sphi 0, %s244
    %s246 = sphi 0, %s244
    %s247 = sphi 0, %s246
    %s261 = sphi 0, %s247
    %s265 = sphi 0, %s265
    %s267 = sphi 0, %s265
    %s268 = sphi 0, %s267
    %s282 = sphi 0, %s268
    %s286 = sphi 0, %s286
    %s288 = sphi 0, %s286
    %s289 = sphi 0, %s288
    %s303 = sphi 0, %s289
    %s307 = sphi 0, %s307
    %s309 = sphi 0, %s307
    %s310 = sphi 0, %s309
    %s324 = sphi 0, %s310
    %s328 = sphi 0, %s328
    %s330 = sphi 0, %s328
    %s331 = sphi 0, %s330
    %s345 = sphi 0, %s331
    %s351 = sphi 0, %s353
    %s354 = sphi 0, %s351
    %s355 = sphi 0, %s354
    %s371 = sphi 0, %s355
  $region4: #{tpu_custom_call.1} parent=0 // loop_header_branch
    %24 = sbr.rel (%p22) target = $region8
  $region5: #{tpu_custom_call.1} parent=0 // loop_body
    %s26 = ssub.s32 %s21, 1
    %s27 = ssub.s32 %s21, 2
    %s28 = sadd.s32 %s21, 1
    %s29 = ssub.s32 %s21, %s28
    %p30 = scmp.eq.s32.totalorder %s29, 0
    %s32 = sadd.s32 %s31, 1
    %s33 = scalar_select %p30, %s31, %s32
    %p36 = pneg %p30
    %p37 = scmp.eq.s32.totalorder %s21, 1
    %p38 = por %p36, %p37
    %p39 = scmp.ne.s32.totalorder %s31, %s34
    %p40 = scmp.eq.s32.totalorder %s21, 0
    %p41 = por %p39, %p40
    %p42 = scmp.ne.s32.totalorder %s31, %s34
    %p43 = scmp.eq.s32.totalorder %s26, 1
    %p44 = por %p42, %p43
    %p45 = scmp.ne.s32.totalorder %s34, %s35
    %p46 = scmp.eq.s32.totalorder %s26, 0
    %p47 = por %p45, %p46
    %p48 = scmp.ne.s32.totalorder %s34, %s35
    %p49 = scmp.eq.s32.totalorder %s27, 1
    %p50 = por %p48, %p49
    %p52 = scmp.ne.s32.totalorder %s35, %s51
    %p53 = scmp.eq.s32.totalorder %s27, 0
    %p54 = por %p52, %p53
    %s56 = sadd.s32 %s55, 1
    %p59 = scmp.eq.s32.totalorder %s21, 1
    %p60 = scmp.ne.s32.totalorder %s55, %s57
    %p61 = scmp.eq.s32.totalorder %s21, 0
    %p62 = por %p60, %p61
    %p63 = scmp.ne.s32.totalorder %s55, %s57
    %p64 = scmp.eq.s32.totalorder %s26, 1
    %p65 = por %p63, %p64
    %p66 = scmp.ne.s32.totalorder %s57, %s58
    %p67 = scmp.eq.s32.totalorder %s26, 0
    %p68 = por %p66, %p67
    %p69 = scmp.ne.s32.totalorder %s57, %s58
    %p70 = scmp.eq.s32.totalorder %s27, 1
    %p71 = por %p69, %p70
    %p73 = scmp.ne.s32.totalorder %s58, %s72
    %p74 = scmp.eq.s32.totalorder %s27, 0
    %p75 = por %p73, %p74
    %s77 = sadd.s32 %s76, 1
    %p80 = scmp.eq.s32.totalorder %s21, 1
    %p81 = scmp.ne.s32.totalorder %s76, %s78
    %p82 = scmp.eq.s32.totalorder %s21, 0
    %p83 = por %p81, %p82
    %p84 = scmp.ne.s32.totalorder %s76, %s78
    %p85 = scmp.eq.s32.totalorder %s26, 1
    %p86 = por %p84, %p85
    %p87 = scmp.ne.s32.totalorder %s78, %s79
    %p88 = scmp.eq.s32.totalorder %s26, 0
    %p89 = por %p87, %p88
    %p90 = scmp.ne.s32.totalorder %s78, %s79
    %p91 = scmp.eq.s32.totalorder %s27, 1
    %p92 = por %p90, %p91
    %p94 = scmp.ne.s32.totalorder %s79, %s93
    %p95 = scmp.eq.s32.totalorder %s27, 0
    %p96 = por %p94, %p95
    %s98 = sadd.s32 %s97, 1
    %p101 = scmp.eq.s32.totalorder %s21, 1
    %p102 = scmp.ne.s32.totalorder %s97, %s99
    %p103 = scmp.eq.s32.totalorder %s21, 0
    %p104 = por %p102, %p103
    %p105 = scmp.ne.s32.totalorder %s97, %s99
    %p106 = scmp.eq.s32.totalorder %s26, 1
    %p107 = por %p105, %p106
    %p108 = scmp.ne.s32.totalorder %s99, %s100
    %p109 = scmp.eq.s32.totalorder %s26, 0
    %p110 = por %p108, %p109
    %p111 = scmp.ne.s32.totalorder %s99, %s100
    %p112 = scmp.eq.s32.totalorder %s27, 1
    %p113 = por %p111, %p112
    %p115 = scmp.ne.s32.totalorder %s100, %s114
    %p116 = scmp.eq.s32.totalorder %s27, 0
    %p117 = por %p115, %p116
    %s119 = sadd.s32 %s118, 1
    %p122 = scmp.eq.s32.totalorder %s21, 1
    %p123 = scmp.ne.s32.totalorder %s118, %s120
    %p124 = scmp.eq.s32.totalorder %s21, 0
    %p125 = por %p123, %p124
    %p126 = scmp.ne.s32.totalorder %s118, %s120
    %p127 = scmp.eq.s32.totalorder %s26, 1
    %p128 = por %p126, %p127
    %p129 = scmp.ne.s32.totalorder %s120, %s121
    %p130 = scmp.eq.s32.totalorder %s26, 0
    %p131 = por %p129, %p130
    %p132 = scmp.ne.s32.totalorder %s120, %s121
    %p133 = scmp.eq.s32.totalorder %s27, 1
    %p134 = por %p132, %p133
    %p136 = scmp.ne.s32.totalorder %s121, %s135
    %p137 = scmp.eq.s32.totalorder %s27, 0
    %p138 = por %p136, %p137
    %s140 = sadd.s32 %s139, 1
    %p143 = scmp.eq.s32.totalorder %s21, 1
    %p144 = scmp.ne.s32.totalorder %s139, %s141
    %p145 = scmp.eq.s32.totalorder %s21, 0
    %p146 = por %p144, %p145
    %p147 = scmp.ne.s32.totalorder %s139, %s141
    %p148 = scmp.eq.s32.totalorder %s26, 1
    %p149 = por %p147, %p148
    %p150 = scmp.ne.s32.totalorder %s141, %s142
    %p151 = scmp.eq.s32.totalorder %s26, 0
    %p152 = por %p150, %p151
    %p153 = scmp.ne.s32.totalorder %s141, %s142
    %p154 = scmp.eq.s32.totalorder %s27, 1
    %p155 = por %p153, %p154
    %p157 = scmp.ne.s32.totalorder %s142, %s156
    %p158 = scmp.eq.s32.totalorder %s27, 0
    %p159 = por %p157, %p158
    %s161 = sadd.s32 %s160, 1
    %p164 = scmp.eq.s32.totalorder %s21, 1
    %p165 = scmp.ne.s32.totalorder %s160, %s162
    %p166 = scmp.eq.s32.totalorder %s21, 0
    %p167 = por %p165, %p166
    %p168 = scmp.ne.s32.totalorder %s160, %s162
    %p169 = scmp.eq.s32.totalorder %s26, 1
    %p170 = por %p168, %p169
    %p171 = scmp.ne.s32.totalorder %s162, %s163
    %p172 = scmp.eq.s32.totalorder %s26, 0
    %p173 = por %p171, %p172
    %p174 = scmp.ne.s32.totalorder %s162, %s163
    %p175 = scmp.eq.s32.totalorder %s27, 1
    %p176 = por %p174, %p175
    %p178 = scmp.ne.s32.totalorder %s163, %s177
    %p179 = scmp.eq.s32.totalorder %s27, 0
    %p180 = por %p178, %p179
    %s182 = sadd.s32 %s181, 1
    %p185 = scmp.eq.s32.totalorder %s21, 1
    %p186 = scmp.ne.s32.totalorder %s181, %s183
    %p187 = scmp.eq.s32.totalorder %s21, 0
    %p188 = por %p186, %p187
    %p189 = scmp.ne.s32.totalorder %s181, %s183
    %p190 = scmp.eq.s32.totalorder %s26, 1
    %p191 = por %p189, %p190
    %p192 = scmp.ne.s32.totalorder %s183, %s184
    %p193 = scmp.eq.s32.totalorder %s26, 0
    %p194 = por %p192, %p193
    %p195 = scmp.ne.s32.totalorder %s183, %s184
    %p196 = scmp.eq.s32.totalorder %s27, 1
    %p197 = por %p195, %p196
    %p199 = scmp.ne.s32.totalorder %s184, %s198
    %p200 = scmp.eq.s32.totalorder %s27, 0
    %p201 = por %p199, %p200
    %s203 = sadd.s32 %s202, 1
    %p206 = scmp.eq.s32.totalorder %s21, 1
    %p207 = scmp.ne.s32.totalorder %s202, %s204
    %p208 = scmp.eq.s32.totalorder %s21, 0
    %p209 = por %p207, %p208
    %p210 = scmp.ne.s32.totalorder %s202, %s204
    %p211 = scmp.eq.s32.totalorder %s26, 1
    %p212 = por %p210, %p211
    %p213 = scmp.ne.s32.totalorder %s204, %s205
    %p214 = scmp.eq.s32.totalorder %s26, 0
    %p215 = por %p213, %p214
    %p216 = scmp.ne.s32.totalorder %s204, %s205
    %p217 = scmp.eq.s32.totalorder %s27, 1
    %p218 = por %p216, %p217
    %p220 = scmp.ne.s32.totalorder %s205, %s219
    %p221 = scmp.eq.s32.totalorder %s27, 0
    %p222 = por %p220, %p221
    %s224 = sadd.s32 %s223, 1
    %p227 = scmp.eq.s32.totalorder %s21, 1
    %p228 = scmp.ne.s32.totalorder %s223, %s225
    %p229 = scmp.eq.s32.totalorder %s21, 0
    %p230 = por %p228, %p229
    %p231 = scmp.ne.s32.totalorder %s223, %s225
    %p232 = scmp.eq.s32.totalorder %s26, 1
    %p233 = por %p231, %p232
    %p234 = scmp.ne.s32.totalorder %s225, %s226
    %p235 = scmp.eq.s32.totalorder %s26, 0
    %p236 = por %p234, %p235
    %p237 = scmp.ne.s32.totalorder %s225, %s226
    %p238 = scmp.eq.s32.totalorder %s27, 1
    %p239 = por %p237, %p238
    %p241 = scmp.ne.s32.totalorder %s226, %s240
    %p242 = scmp.eq.s32.totalorder %s27, 0
    %p243 = por %p241, %p242
    %s245 = sadd.s32 %s244, 1
    %p248 = scmp.eq.s32.totalorder %s21, 1
    %p249 = scmp.ne.s32.totalorder %s244, %s246
    %p250 = scmp.eq.s32.totalorder %s21, 0
    %p251 = por %p249, %p250
    %p252 = scmp.ne.s32.totalorder %s244, %s246
    %p253 = scmp.eq.s32.totalorder %s26, 1
    %p254 = por %p252, %p253
    %p255 = scmp.ne.s32.totalorder %s246, %s247
    %p256 = scmp.eq.s32.totalorder %s26, 0
    %p257 = por %p255, %p256
    %p258 = scmp.ne.s32.totalorder %s246, %s247
    %p259 = scmp.eq.s32.totalorder %s27, 1
    %p260 = por %p258, %p259
    %p262 = scmp.ne.s32.totalorder %s247, %s261
    %p263 = scmp.eq.s32.totalorder %s27, 0
    %p264 = por %p262, %p263
    %s266 = sadd.s32 %s265, 1
    %p269 = scmp.eq.s32.totalorder %s21, 1
    %p270 = scmp.ne.s32.totalorder %s265, %s267
    %p271 = scmp.eq.s32.totalorder %s21, 0
    %p272 = por %p270, %p271
    %p273 = scmp.ne.s32.totalorder %s265, %s267
    %p274 = scmp.eq.s32.totalorder %s26, 1
    %p275 = por %p273, %p274
    %p276 = scmp.ne.s32.totalorder %s267, %s268
    %p277 = scmp.eq.s32.totalorder %s26, 0
    %p278 = por %p276, %p277
    %p279 = scmp.ne.s32.totalorder %s267, %s268
    %p280 = scmp.eq.s32.totalorder %s27, 1
    %p281 = por %p279, %p280
    %p283 = scmp.ne.s32.totalorder %s268, %s282
    %p284 = scmp.eq.s32.totalorder %s27, 0
    %p285 = por %p283, %p284
    %s287 = sadd.s32 %s286, 1
    %p290 = scmp.eq.s32.totalorder %s21, 1
    %p291 = scmp.ne.s32.totalorder %s286, %s288
    %p292 = scmp.eq.s32.totalorder %s21, 0
    %p293 = por %p291, %p292
    %p294 = scmp.ne.s32.totalorder %s286, %s288
    %p295 = scmp.eq.s32.totalorder %s26, 1
    %p296 = por %p294, %p295
    %p297 = scmp.ne.s32.totalorder %s288, %s289
    %p298 = scmp.eq.s32.totalorder %s26, 0
    %p299 = por %p297, %p298
    %p300 = scmp.ne.s32.totalorder %s288, %s289
    %p301 = scmp.eq.s32.totalorder %s27, 1
    %p302 = por %p300, %p301
    %p304 = scmp.ne.s32.totalorder %s289, %s303
    %p305 = scmp.eq.s32.totalorder %s27, 0
    %p306 = por %p304, %p305
    %s308 = sadd.s32 %s307, 1
    %p311 = scmp.eq.s32.totalorder %s21, 1
    %p312 = scmp.ne.s32.totalorder %s307, %s309
    %p313 = scmp.eq.s32.totalorder %s21, 0
    %p314 = por %p312, %p313
    %p315 = scmp.ne.s32.totalorder %s307, %s309
    %p316 = scmp.eq.s32.totalorder %s26, 1
    %p317 = por %p315, %p316
    %p318 = scmp.ne.s32.totalorder %s309, %s310
    %p319 = scmp.eq.s32.totalorder %s26, 0
    %p320 = por %p318, %p319
    %p321 = scmp.ne.s32.totalorder %s309, %s310
    %p322 = scmp.eq.s32.totalorder %s27, 1
    %p323 = por %p321, %p322
    %p325 = scmp.ne.s32.totalorder %s310, %s324
    %p326 = scmp.eq.s32.totalorder %s27, 0
    %p327 = por %p325, %p326
    %s329 = sadd.s32 %s328, 1
    %p332 = scmp.eq.s32.totalorder %s21, 1
    %p333 = scmp.ne.s32.totalorder %s328, %s330
    %p334 = scmp.eq.s32.totalorder %s21, 0
    %p335 = por %p333, %p334
    %p336 = scmp.ne.s32.totalorder %s328, %s330
    %p337 = scmp.eq.s32.totalorder %s26, 1
    %p338 = por %p336, %p337
    %p339 = scmp.ne.s32.totalorder %s330, %s331
    %p340 = scmp.eq.s32.totalorder %s26, 0
    %p341 = por %p339, %p340
    %p342 = scmp.ne.s32.totalorder %s330, %s331
    %p343 = scmp.eq.s32.totalorder %s27, 1
    %p344 = por %p342, %p343
    %p346 = scmp.ne.s32.totalorder %s331, %s345
    %p347 = scmp.eq.s32.totalorder %s27, 0
    %p348 = por %p346, %p347
    %s349 = ssub.s32 %s21, %s28
    %p350 = scmp.eq.s32.totalorder %s349, 0
    %s352 = sadd.s32 %s351, 1
    %s353 = scalar_select %p350, %s351, %s352
    %p356 = pneg %p350
    %p357 = scmp.eq.s32.totalorder %s21, 1
    %p358 = por %p356, %p357
    %p359 = scmp.ne.s32.totalorder %s351, %s354
    %p360 = scmp.eq.s32.totalorder %s21, 0
    %p361 = por %p359, %p360
    %p362 = scmp.ne.s32.totalorder %s351, %s354
    %p363 = scmp.eq.s32.totalorder %s26, 1
    %p364 = por %p362, %p363
    %p365 = scmp.ne.s32.totalorder %s354, %s355
    %p366 = scmp.eq.s32.totalorder %s26, 0
    %p367 = por %p365, %p366
    %p368 = scmp.ne.s32.totalorder %s354, %s355
    %p369 = scmp.eq.s32.totalorder %s27, 1
    %p370 = por %p368, %p369
    %p372 = scmp.ne.s32.totalorder %s355, %s371
    %p373 = scmp.eq.s32.totalorder %s27, 0
    %p374 = por %p372, %p373
    %p375 = scmp.le.s32.totalorder 1, %s21
    %p376 = scmp.lt.s32.totalorder %s21, 3
    %p377 = pnand %p375, %p376
    %p378 = pneg %p377
    // Predicated region
    $region9: #{tpu_custom_call.1} parent=5 // pred_check
      _
    $region10: #{tpu_custom_call.1} parent=5 // pred_check_branch
      %380 = sbr.rel (%p377) target = $region12
    $region11: #{tpu_custom_call.1} parent=5 // pred_region
      %s381 = ssub.s32 %s21, 1
      // Predicated region
      $region13: #{tpu_custom_call.1} parent=11 // pred_check
        %p382 = pneg %p68
      $region14: #{tpu_custom_call.1} parent=11 // pred_check_branch
        %384 = sbr.rel (%p382) target = $region16
      $region15: #{tpu_custom_call.1} parent=11 // pred_region
        _
      $region16: #{tpu_custom_call.1} parent=11 // pred_fallthru
        _
      // Predicated region
      $region17: #{tpu_custom_call.1} parent=11 // pred_check
        %p385 = pneg %p89
      $region18: #{tpu_custom_call.1} parent=11 // pred_check_branch
        %387 = sbr.rel (%p385) target = $region20
      $region19: #{tpu_custom_call.1} parent=11 // pred_region
        _
      $region20: #{tpu_custom_call.1} parent=11 // pred_fallthru
        _
      // Predicated region
      $region21: #{tpu_custom_call.1} parent=11 // pred_check
        %p388 = pneg %p110
      $region22: #{tpu_custom_call.1} parent=11 // pred_check_branch
        %390 = sbr.rel (%p388) target = $region24
      $region23: #{tpu_custom_call.1} parent=11 // pred_region
        _
      $region24: #{tpu_custom_call.1} parent=11 // pred_fallthru
        _
      // Predicated region
      $region25: #{tpu_custom_call.1} parent=11 // pred_check
        %p391 = pneg %p131
      $region26: #{tpu_custom_call.1} parent=11 // pred_check_branch
        %393 = sbr.rel (%p391) target = $region28
      $region27: #{tpu_custom_call.1} parent=11 // pred_region
        _
      $region28: #{tpu_custom_call.1} parent=11 // pred_fallthru
        _
      // Predicated region
      $region29: #{tpu_custom_call.1} parent=11 // pred_check
        %p394 = pneg %p152
      $region30: #{tpu_custom_call.1} parent=11 // pred_check_branch
        %396 = sbr.rel (%p394) target = $region32
      $region31: #{tpu_custom_call.1} parent=11 // pred_region
        _
      $region32: #{tpu_custom_call.1} parent=11 // pred_fallthru
        _
      // Predicated region
      $region33: #{tpu_custom_call.1} parent=11 // pred_check
        %p397 = pneg %p173
      $region34: #{tpu_custom_call.1} parent=11 // pred_check_branch
        %399 = sbr.rel (%p397) target = $region36
      $region35: #{tpu_custom_call.1} parent=11 // pred_region
        _
      $region36: #{tpu_custom_call.1} parent=11 // pred_fallthru
        _
      // Predicated region
      $region37: #{tpu_custom_call.1} parent=11 // pred_check
        %p400 = pneg %p194
      $region38: #{tpu_custom_call.1} parent=11 // pred_check_branch
        %402 = sbr.rel (%p400) target = $region40
      $region39: #{tpu_custom_call.1} parent=11 // pred_region
        _
      $region40: #{tpu_custom_call.1} parent=11 // pred_fallthru
        _
      // Predicated region
      $region41: #{tpu_custom_call.1} parent=11 // pred_check
        %p403 = pneg %p215
      $region42: #{tpu_custom_call.1} parent=11 // pred_check_branch
        %405 = sbr.rel (%p403) target = $region44
      $region43: #{tpu_custom_call.1} parent=11 // pred_region
        _
      $region44: #{tpu_custom_call.1} parent=11 // pred_fallthru
        _
      // Predicated region
      $region45: #{tpu_custom_call.1} parent=11 // pred_check
        %p406 = pneg %p236
      $region46: #{tpu_custom_call.1} parent=11 // pred_check_branch
        %408 = sbr.rel (%p406) target = $region48
      $region47: #{tpu_custom_call.1} parent=11 // pred_region
        _
      $region48: #{tpu_custom_call.1} parent=11 // pred_fallthru
        _
      // Predicated region
      $region49: #{tpu_custom_call.1} parent=11 // pred_check
        %p409 = pneg %p257
      $region50: #{tpu_custom_call.1} parent=11 // pred_check_branch
        %411 = sbr.rel (%p409) target = $region52
      $region51: #{tpu_custom_call.1} parent=11 // pred_region
        _
      $region52: #{tpu_custom_call.1} parent=11 // pred_fallthru
        _
      // Predicated region
      $region53: #{tpu_custom_call.1} parent=11 // pred_check
        %p412 = pneg %p278
      $region54: #{tpu_custom_call.1} parent=11 // pred_check_branch
        %414 = sbr.rel (%p412) target = $region56
      $region55: #{tpu_custom_call.1} parent=11 // pred_region
        _
      $region56: #{tpu_custom_call.1} parent=11 // pred_fallthru
        _
      // Predicated region
      $region57: #{tpu_custom_call.1} parent=11 // pred_check
        %p415 = pneg %p299
      $region58: #{tpu_custom_call.1} parent=11 // pred_check_branch
        %417 = sbr.rel (%p415) target = $region60
      $region59: #{tpu_custom_call.1} parent=11 // pred_region
        _
      $region60: #{tpu_custom_call.1} parent=11 // pred_fallthru
        _
      // Predicated region
      $region61: #{tpu_custom_call.1} parent=11 // pred_check
        %p418 = pneg %p320
      $region62: #{tpu_custom_call.1} parent=11 // pred_check_branch
        %420 = sbr.rel (%p418) target = $region64
      $region63: #{tpu_custom_call.1} parent=11 // pred_region
        _
      $region64: #{tpu_custom_call.1} parent=11 // pred_fallthru
        _
      // Predicated region
      $region65: #{tpu_custom_call.1} parent=11 // pred_check
        %p421 = pneg %p341
      $region66: #{tpu_custom_call.1} parent=11 // pred_check_branch
        %423 = sbr.rel (%p421) target = $region68
      $region67: #{tpu_custom_call.1} parent=11 // pred_region
        _
      $region68: #{tpu_custom_call.1} parent=11 // pred_fallthru
        _
    $region12: #{tpu_custom_call.1} parent=5 // pred_fallthru
      _
    %p424 = scmp.lt.s32.totalorder %s21, 2
    // Predicated region
    $region69: #{tpu_custom_call.1} parent=5 // pred_check
      %p425 = pneg %p424
    $region70: #{tpu_custom_call.1} parent=5 // pred_check_branch
      %427 = sbr.rel (%p425) target = $region72
    $region71: #{tpu_custom_call.1} parent=5 // pred_region
      // Predicated region
      $region73: #{tpu_custom_call.1} parent=71 // pred_check
        %p428 = pneg %p41
      $region74: #{tpu_custom_call.1} parent=71 // pred_check_branch
        %430 = sbr.rel (%p428) target = $region76
      $region75: #{tpu_custom_call.1} parent=71 // pred_region
        %p431 = scmp.lt.s32.totalorder %s21, 1
        %s432 = scalar_select %p431, %s21, 1
        %s433 = smul.addr %s432, 8
        %s434 = smul.addr %s433, 8
        %s435 = scalar_lea.vmem %s0, %s434
      $region76: #{tpu_custom_call.1} parent=71 // pred_fallthru
        _
    $region72: #{tpu_custom_call.1} parent=5 // pred_fallthru
      _
    %p436 = scmp.le.s32.totalorder 1, %s21
    %p437 = scmp.lt.s32.totalorder %s21, 3
    %p438 = pnand %p436, %p437
    %p439 = pneg %p438
    // Predicated region
    $region77: #{tpu_custom_call.1} parent=5 // pred_check
      _
    $region78: #{tpu_custom_call.1} parent=5 // pred_check_branch
      %441 = sbr.rel (%p438) target = $region80
    $region79: #{tpu_custom_call.1} parent=5 // pred_region
      %s442 = ssub.s32 %s21, 1
      %p443 = scmp.lt.s32.totalorder %s26, 1
      %s444 = scalar_select %p443, %s26, 1
      %s445 = smul.addr %s444, 8
      %s446 = smul.addr %s445, 8
      %s447 = scalar_lea.vmem %s0, %s446
      %p448 = pneg %p47
      %p449 = pneg %p44
      %p450 = pneg %p68
      %p451 = pneg %p65
      %p452 = pneg %p89
      %p453 = pneg %p86
      %p454 = pneg %p110
      %p455 = pneg %p107
      %p456 = pneg %p131
      %p457 = pneg %p128
      %p458 = pneg %p152
      %p459 = pneg %p149
      %p460 = pneg %p173
      %p461 = pneg %p170
      %p462 = pneg %p194
      %p463 = pneg %p191
      %p464 = pneg %p215
      %p465 = pneg %p212
      %p466 = pneg %p236
      %p467 = pneg %p233
      %p468 = pneg %p257
      %p469 = pneg %p254
      %p470 = pneg %p278
      %p471 = pneg %p275
      %p472 = pneg %p299
      %p473 = pneg %p296
      %p474 = pneg %p320
      %p475 = pneg %p317
      %p476 = pneg %p341
      %p477 = pneg %p338
      %p478 = pneg %p367
      %p479 = pneg %p364
      %p480 = scmp.lt.s32.totalorder %s26, 1
      %s481 = scalar_select %p480, %s26, 1
      %s482 = smul.addr %s481, 8
      %s483 = smul.addr %s482, 8
      %s484 = scalar_lea.vmem %s15, %s483
      %p485 = scmp.lt.s32.totalorder %s26, 1
      %s486 = scalar_select %p485, %s26, 1
      %s487 = smul.addr %s486, 8
      %s488 = smul.addr %s487, 8
      %s489 = scalar_lea.vmem %s0, %s488
      %p490 = scmp.lt.s32.totalorder %s26, 1
      %s491 = scalar_select %p490, %s26, 1
      %s492 = smul.addr %s491, 8
      %s493 = smul.addr %s492, 8
      %s494 = scalar_lea.vmem %s15, %s493
      %v495 = vld [vmem:[%s489] sm:$0xff]
      %v496 = vld [vmem:[%s489 + $0x8] sm:$0xff]
      %v497 = vld [vmem:[%s489 + $0x10] sm:$0xff]
      %v498 = vld [vmem:[%s489 + $0x18] sm:$0xff]
      %v499 = vld [vmem:[%s489 + $0x20] sm:$0xff]
      %v500 = vld [vmem:[%s489 + $0x28] sm:$0xff]
      %v501 = vld [vmem:[%s489 + $0x30] sm:$0xff]
      %v502 = vld [vmem:[%s489 + $0x38] sm:$0xff]
      %v503 = vld [vmem:[%s1] sm:$0xff]
      %v504 = vld [vmem:[%s1 + $0x8] sm:$0xff]
      %v505 = vld [vmem:[%s1 + $0x10] sm:$0xff]
      %v506 = vld [vmem:[%s1 + $0x18] sm:$0xff]
      %v507 = vld [vmem:[%s1 + $0x20] sm:$0xff]
      %v508 = vld [vmem:[%s1 + $0x28] sm:$0xff]
      %v509 = vld [vmem:[%s1 + $0x30] sm:$0xff]
      %v510 = vld [vmem:[%s1 + $0x38] sm:$0xff]
      %v511 = vld [vmem:[%s2] sm:$0xff]
      %v512 = vld [vmem:[%s2 + $0x8] sm:$0xff]
      %v513 = vld [vmem:[%s2 + $0x10] sm:$0xff]
      %v514 = vld [vmem:[%s2 + $0x18] sm:$0xff]
      %v515 = vld [vmem:[%s2 + $0x20] sm:$0xff]
      %v516 = vld [vmem:[%s2 + $0x28] sm:$0xff]
      %v517 = vld [vmem:[%s2 + $0x30] sm:$0xff]
      %v518 = vld [vmem:[%s2 + $0x38] sm:$0xff]
      %520 = vset.pattern.permute.xlu0 0
      %521 = vperm.xlu0 %520, %v511
      %v522 = vpop.permute.xlu0 %521
      %525 = vset.pattern.permute.xlu0 0
      %526 = vperm.xlu0 %525, %v512
      %v527 = vpop.permute.xlu0 %526
      %530 = vset.pattern.permute.xlu0 0
      %531 = vperm.xlu0 %530, %v513
      %v532 = vpop.permute.xlu0 %531
      %535 = vset.pattern.permute.xlu0 0
      %536 = vperm.xlu0 %535, %v514
      %v537 = vpop.permute.xlu0 %536
      %540 = vset.pattern.permute.xlu0 0
      %541 = vperm.xlu0 %540, %v515
      %v542 = vpop.permute.xlu0 %541
      %545 = vset.pattern.permute.xlu0 0
      %546 = vperm.xlu0 %545, %v516
      %v547 = vpop.permute.xlu0 %546
      %550 = vset.pattern.permute.xlu0 0
      %551 = vperm.xlu0 %550, %v517
      %v552 = vpop.permute.xlu0 %551
      %555 = vset.pattern.permute.xlu0 0
      %556 = vperm.xlu0 %555, %v518
      %v557 = vpop.permute.xlu0 %556
      %vm559 = vcmask 523264
      %v561 = vsel %vm559, %v503, 0
      %v564 = vsel %vm559, %v504, 0
      %v567 = vsel %vm559, %v505, 0
      %v570 = vsel %vm559, %v506, 0
      %v573 = vsel %vm559, %v507, 0
      %v576 = vsel %vm559, %v508, 0
      %v579 = vsel %vm559, %v509, 0
      %v582 = vsel %vm559, %v510, 0
      %584 = vmatpush.msra.mxu0 0.0
      %585 = vmatpush.msra.mxu0 0.0
      %586 = vmatpush.msra.mxu0 0.0
      %587 = vmatpush.msra.mxu0 0.0
      %588 = vmatpush.msra.mxu0 0.0
      %589 = vmatpush.msra.mxu0 0.0
      %590 = vmatpush.msra.mxu0 0.0
      %591 = vmatpush.msra.mxu0 0.0
      %592 = vmatpush.msra.mxu0 %v502
      %593 = vmatpush.msra.mxu0 %v501
      %594 = vmatpush.msra.mxu0 %v500
      %595 = vmatpush.msra.mxu0 %v499
      %596 = vmatpush.msra.mxu0 %v498
      %597 = vmatpush.msra.mxu0 %v497
      %598 = vmatpush.msra.mxu0 %v496
      %599 = vmatpush.msra.mxu0 %v495
      %600 = vmatmul.f32.gmra.mxu0 %v561
      %v601 = vpop.f32.mrf.mxu0
      %v602 = vadd.f32 %v522, %v601
      %603 = vmatmul.f32.gmra.mxu0 %v564
      %v604 = vpop.f32.mrf.mxu0
      %v605 = vadd.f32 %v527, %v604
      %606 = vmatmul.f32.gmra.mxu0 %v567
      %v607 = vpop.f32.mrf.mxu0
      %v608 = vadd.f32 %v532, %v607
      %609 = vmatmul.f32.gmra.mxu0 %v570
      %v610 = vpop.f32.mrf.mxu0
      %v611 = vadd.f32 %v537, %v610
      %612 = vmatmul.f32.gmra.mxu0 %v573
      %v613 = vpop.f32.mrf.mxu0
      %v614 = vadd.f32 %v542, %v613
      %615 = vmatmul.f32.gmra.mxu0 %v576
      %v616 = vpop.f32.mrf.mxu0
      %v617 = vadd.f32 %v547, %v616
      %618 = vmatmul.f32.gmra.mxu0 %v579
      %v619 = vpop.f32.mrf.mxu0
      %v620 = vadd.f32 %v552, %v619
      %621 = vmatmul.f32.gmra.mxu0 %v582
      %v622 = vpop.f32.mrf.mxu0
      %v623 = vadd.f32 %v557, %v622
      %624 = vdwg.mxu0
      %v625 = vmax.f32 %v602, 0.0
      %v626 = vmax.f32 %v605, 0.0
      %v627 = vmax.f32 %v608, 0.0
      %v628 = vmax.f32 %v611, 0.0
      %v629 = vmax.f32 %v614, 0.0
      %v630 = vmax.f32 %v617, 0.0
      %v631 = vmax.f32 %v620, 0.0
      %v632 = vmax.f32 %v623, 0.0
      %v633 = vld [vmem:[%s3] sm:$0xff]
      %v634 = vld [vmem:[%s3 + $0x8] sm:$0xff]
      %v635 = vld [vmem:[%s3 + $0x10] sm:$0xff]
      %v636 = vld [vmem:[%s3 + $0x18] sm:$0xff]
      %v637 = vld [vmem:[%s3 + $0x20] sm:$0xff]
      %v638 = vld [vmem:[%s3 + $0x28] sm:$0xff]
      %v639 = vld [vmem:[%s3 + $0x30] sm:$0xff]
      %v640 = vld [vmem:[%s3 + $0x38] sm:$0xff]
      %642 = vset.pattern.permute.xlu0 0
      %643 = vperm.xlu0 %642, %v633
      %v644 = vpop.permute.xlu0 %643
      %647 = vset.pattern.permute.xlu0 0
      %648 = vperm.xlu0 %647, %v634
      %v649 = vpop.permute.xlu0 %648
      %652 = vset.pattern.permute.xlu0 0
      %653 = vperm.xlu0 %652, %v635
      %v654 = vpop.permute.xlu0 %653
      %657 = vset.pattern.permute.xlu0 0
      %658 = vperm.xlu0 %657, %v636
      %v659 = vpop.permute.xlu0 %658
      %662 = vset.pattern.permute.xlu0 0
      %663 = vperm.xlu0 %662, %v637
      %v664 = vpop.permute.xlu0 %663
      %667 = vset.pattern.permute.xlu0 0
      %668 = vperm.xlu0 %667, %v638
      %v669 = vpop.permute.xlu0 %668
      %672 = vset.pattern.permute.xlu0 0
      %673 = vperm.xlu0 %672, %v639
      %v674 = vpop.permute.xlu0 %673
      %677 = vset.pattern.permute.xlu0 0
      %678 = vperm.xlu0 %677, %v640
      %v679 = vpop.permute.xlu0 %678
      %v681 = vmul.f32 %v625, %v644
      %v682 = vmul.f32 %v626, %v649
      %v683 = vmul.f32 %v627, %v654
      %v684 = vmul.f32 %v628, %v659
      %v685 = vmul.f32 %v629, %v664
      %v686 = vmul.f32 %v630, %v669
      %v687 = vmul.f32 %v631, %v674
      %v688 = vmul.f32 %v632, %v679
      %v689 = vld [vmem:[%s4] sm:$0xff]
      %v690 = vld [vmem:[%s4 + $0x8] sm:$0xff]
      %v691 = vld [vmem:[%s4 + $0x10] sm:$0xff]
      %v692 = vld [vmem:[%s4 + $0x18] sm:$0xff]
      %v693 = vld [vmem:[%s4 + $0x20] sm:$0xff]
      %v694 = vld [vmem:[%s4 + $0x28] sm:$0xff]
      %v695 = vld [vmem:[%s4 + $0x30] sm:$0xff]
      %v696 = vld [vmem:[%s4 + $0x38] sm:$0xff]
      %698 = vset.pattern.permute.xlu0 0
      %699 = vperm.xlu0 %698, %v689
      %v700 = vpop.permute.xlu0 %699
      %703 = vset.pattern.permute.xlu0 0
      %704 = vperm.xlu0 %703, %v690
      %v705 = vpop.permute.xlu0 %704
      %708 = vset.pattern.permute.xlu0 0
      %709 = vperm.xlu0 %708, %v691
      %v710 = vpop.permute.xlu0 %709
      %713 = vset.pattern.permute.xlu0 0
      %714 = vperm.xlu0 %713, %v692
      %v715 = vpop.permute.xlu0 %714
      %718 = vset.pattern.permute.xlu0 0
      %719 = vperm.xlu0 %718, %v693
      %v720 = vpop.permute.xlu0 %719
      %723 = vset.pattern.permute.xlu0 0
      %724 = vperm.xlu0 %723, %v694
      %v725 = vpop.permute.xlu0 %724
      %728 = vset.pattern.permute.xlu0 0
      %729 = vperm.xlu0 %728, %v695
      %v730 = vpop.permute.xlu0 %729
      %733 = vset.pattern.permute.xlu0 0
      %734 = vperm.xlu0 %733, %v696
      %v735 = vpop.permute.xlu0 %734
      %v737 = vadd.f32 %v681, %v700
      %v738 = vadd.f32 %v682, %v705
      %v739 = vadd.f32 %v683, %v710
      %v740 = vadd.f32 %v684, %v715
      %v741 = vadd.f32 %v685, %v720
      %v742 = vadd.f32 %v686, %v725
      %v743 = vadd.f32 %v687, %v730
      %v744 = vadd.f32 %v688, %v735
      %747 = vrot.lane.b32.xlu0 %v737, 1
      %v748 = vpop.permute.xlu0 %747
      %749 = vrot.lane.b32.xlu0 %v738, 1
      %v750 = vpop.permute.xlu0 %749
      %vm753 = vcmask 7168
      %v754 = vsel %vm753, 0.0, %v748
      %v755 = vsel %vm753, 0.0, %v750
      %vm756 = vcmask 138240
      %v757 = vsel %vm756, %v754, 0.0
      %v758 = vsel %vm756, %v755, 0.0
      %761 = vrot.lane.b32.xlu0 %v757, 127
      %v762 = vpop.permute.xlu0 %761
      %763 = vrot.lane.b32.xlu0 %v758, 127
      %v764 = vpop.permute.xlu0 %763
      %767 = vrot.lane.b32.xlu0 %v757, 126
      %v768 = vpop.permute.xlu0 %767
      %769 = vrot.lane.b32.xlu0 %v758, 126
      %v770 = vpop.permute.xlu0 %769
      %v773 = vld [vmem:[%s6] sm:$0xff]
      %v774 = vld [vmem:[%s6 + $0x8] sm:$0xff]
      %v775 = vld [vmem:[%s5] sm:$0xff]
      %v776 = vld [vmem:[%s5 + $0x8] sm:$0xff]
      %vm777 = vcmask 392192
      %v779 = vsel %vm777, %v775, 0
      %v782 = vsel %vm777, %v776, 0
      %784 = vmatpush.msra.mxu0 0.0
      %785 = vmatpush.msra.mxu0 0.0
      %786 = vmatpush.msra.mxu0 0.0
      %787 = vmatpush.msra.mxu0 0.0
      %788 = vmatpush.msra.mxu0 0.0
      %789 = vmatpush.msra.mxu0 0.0
      %790 = vmatpush.msra.mxu0 0.0
      %791 = vmatpush.msra.mxu0 0.0
      %792 = vmatpush.msra.mxu0 0.0
      %793 = vmatpush.msra.mxu0 0.0
      %794 = vmatpush.msra.mxu0 %v770
      %795 = vmatpush.msra.mxu0 %v768
      %796 = vmatpush.msra.mxu0 %v764
      %797 = vmatpush.msra.mxu0 %v762
      %798 = vmatpush.msra.mxu0 %v758
      %799 = vmatpush.msra.mxu0 %v757
      %800 = vmatmul.f32.gmra.mxu0 %v779
      %v801 = vpop.f32.mrf.mxu0
      %v802 = vadd.f32 0.0, %v801
      %803 = vmatmul.f32.gmra.mxu0 %v782
      %v804 = vpop.f32.mrf.mxu0
      %v805 = vadd.f32 0.0, %v804
      %806 = vdwg.mxu0
      %808 = vset.pattern.permute.xlu0 0
      %809 = vperm.xlu0 %808, %v773
      %v810 = vpop.permute.xlu0 %809
      %813 = vset.pattern.permute.xlu0 0
      %814 = vperm.xlu0 %813, %v774
      %v815 = vpop.permute.xlu0 %814
      %v817 = vadd.f32 %v810, %v802
      %v818 = vadd.f32 %v815, %v805
      %v819 = vadd.f32 %v817, %v739
      %v820 = vadd.f32 %v818, %v740
      %823 = vrot.lane.b32.xlu0 %v819, 1
      %v824 = vpop.permute.xlu0 %823
      %825 = vrot.lane.b32.xlu0 %v820, 1
      %v826 = vpop.permute.xlu0 %825
      %v829 = vsel %vm753, 0.0, %v824
      %v830 = vsel %vm753, 0.0, %v826
      %v831 = vsel %vm756, %v829, 0.0
      %v832 = vsel %vm756, %v830, 0.0
      %835 = vrot.lane.b32.xlu0 %v831, 127
      %v836 = vpop.permute.xlu0 %835
      %837 = vrot.lane.b32.xlu0 %v832, 127
      %v838 = vpop.permute.xlu0 %837
      %841 = vrot.lane.b32.xlu0 %v831, 126
      %v842 = vpop.permute.xlu0 %841
      %843 = vrot.lane.b32.xlu0 %v832, 126
      %v844 = vpop.permute.xlu0 %843
      %s847 = scalar_lea.vmem %s6, 16
      %v848 = vld [vmem:[%s847] sm:$0xff]
      %v849 = vld [vmem:[%s847 + $0x8] sm:$0xff]
      %s850 = scalar_lea.vmem %s5, 16
      %v851 = vld [vmem:[%s850] sm:$0xff]
      %v852 = vld [vmem:[%s850 + $0x8] sm:$0xff]
      %v854 = vsel %vm777, %v851, 0
      %v857 = vsel %vm777, %v852, 0
      %859 = vmatpush.msra.mxu0 0.0
      %860 = vmatpush.msra.mxu0 0.0
      %861 = vmatpush.msra.mxu0 0.0
      %862 = vmatpush.msra.mxu0 0.0
      %863 = vmatpush.msra.mxu0 0.0
      %864 = vmatpush.msra.mxu0 0.0
      %865 = vmatpush.msra.mxu0 0.0
      %866 = vmatpush.msra.mxu0 0.0
      %867 = vmatpush.msra.mxu0 0.0
      %868 = vmatpush.msra.mxu0 0.0
      %869 = vmatpush.msra.mxu0 %v844
      %870 = vmatpush.msra.mxu0 %v842
      %871 = vmatpush.msra.mxu0 %v838
      %872 = vmatpush.msra.mxu0 %v836
      %873 = vmatpush.msra.mxu0 %v832
      %874 = vmatpush.msra.mxu0 %v831
      %875 = vmatmul.f32.gmra.mxu0 %v854
      %v876 = vpop.f32.mrf.mxu0
      %v877 = vadd.f32 0.0, %v876
      %878 = vmatmul.f32.gmra.mxu0 %v857
      %v879 = vpop.f32.mrf.mxu0
      %v880 = vadd.f32 0.0, %v879
      %881 = vdwg.mxu0
      %883 = vset.pattern.permute.xlu0 0
      %884 = vperm.xlu0 %883, %v848
      %v885 = vpop.permute.xlu0 %884
      %888 = vset.pattern.permute.xlu0 0
      %889 = vperm.xlu0 %888, %v849
      %v890 = vpop.permute.xlu0 %889
      %v892 = vadd.f32 %v885, %v877
      %v893 = vadd.f32 %v890, %v880
      %v894 = vadd.f32 %v892, %v741
      %v895 = vadd.f32 %v893, %v742
      %898 = vrot.lane.b32.xlu0 %v894, 1
      %v899 = vpop.permute.xlu0 %898
      %900 = vrot.lane.b32.xlu0 %v895, 1
      %v901 = vpop.permute.xlu0 %900
      %v904 = vsel %vm753, 0.0, %v899
      %v905 = vsel %vm753, 0.0, %v901
      %v906 = vsel %vm756, %v904, 0.0
      %v907 = vsel %vm756, %v905, 0.0
      %910 = vrot.lane.b32.xlu0 %v906, 127
      %v911 = vpop.permute.xlu0 %910
      %912 = vrot.lane.b32.xlu0 %v907, 127
      %v913 = vpop.permute.xlu0 %912
      %916 = vrot.lane.b32.xlu0 %v906, 126
      %v917 = vpop.permute.xlu0 %916
      %918 = vrot.lane.b32.xlu0 %v907, 126
      %v919 = vpop.permute.xlu0 %918
      %s922 = scalar_lea.vmem %s6, 32
      %v923 = vld [vmem:[%s922] sm:$0xff]
      %v924 = vld [vmem:[%s922 + $0x8] sm:$0xff]
      %s925 = scalar_lea.vmem %s5, 32
      %v926 = vld [vmem:[%s925] sm:$0xff]
      %v927 = vld [vmem:[%s925 + $0x8] sm:$0xff]
      %v929 = vsel %vm777, %v926, 0
      %v932 = vsel %vm777, %v927, 0
      %934 = vmatpush.msra.mxu0 0.0
      %935 = vmatpush.msra.mxu0 0.0
      %936 = vmatpush.msra.mxu0 0.0
      %937 = vmatpush.msra.mxu0 0.0
      %938 = vmatpush.msra.mxu0 0.0
      %939 = vmatpush.msra.mxu0 0.0
      %940 = vmatpush.msra.mxu0 0.0
      %941 = vmatpush.msra.mxu0 0.0
      %942 = vmatpush.msra.mxu0 0.0
      %943 = vmatpush.msra.mxu0 0.0
      %944 = vmatpush.msra.mxu0 %v919
      %945 = vmatpush.msra.mxu0 %v917
      %946 = vmatpush.msra.mxu0 %v913
      %947 = vmatpush.msra.mxu0 %v911
      %948 = vmatpush.msra.mxu0 %v907
      %949 = vmatpush.msra.mxu0 %v906
      %950 = vmatmul.f32.gmra.mxu0 %v929
      %v951 = vpop.f32.mrf.mxu0
      %v952 = vadd.f32 0.0, %v951
      %953 = vmatmul.f32.gmra.mxu0 %v932
      %v954 = vpop.f32.mrf.mxu0
      %v955 = vadd.f32 0.0, %v954
      %956 = vdwg.mxu0
      %958 = vset.pattern.permute.xlu0 0
      %959 = vperm.xlu0 %958, %v923
      %v960 = vpop.permute.xlu0 %959
      %963 = vset.pattern.permute.xlu0 0
      %964 = vperm.xlu0 %963, %v924
      %v965 = vpop.permute.xlu0 %964
      %v967 = vadd.f32 %v960, %v952
      %v968 = vadd.f32 %v965, %v955
      %v969 = vld [vmem:[%s7] sm:$0xff]
      %v970 = vld [vmem:[%s7 + $0x8] sm:$0xff]
      %v971 = vld [vmem:[%s7 + $0x10] sm:$0xff]
      %v972 = vld [vmem:[%s7 + $0x18] sm:$0xff]
      %v973 = vld [vmem:[%s7 + $0x20] sm:$0xff]
      %v974 = vld [vmem:[%s7 + $0x28] sm:$0xff]
      %v975 = vld [vmem:[%s7 + $0x30] sm:$0xff]
      %v976 = vld [vmem:[%s7 + $0x38] sm:$0xff]
      %v977 = vld [vmem:[%s8] sm:$0xff]
      %v978 = vld [vmem:[%s8 + $0x8] sm:$0xff]
      %v979 = vld [vmem:[%s8 + $0x10] sm:$0xff]
      %v980 = vld [vmem:[%s8 + $0x18] sm:$0xff]
      %v981 = vld [vmem:[%s8 + $0x20] sm:$0xff]
      %v982 = vld [vmem:[%s8 + $0x28] sm:$0xff]
      %v983 = vld [vmem:[%s8 + $0x30] sm:$0xff]
      %v984 = vld [vmem:[%s8 + $0x38] sm:$0xff]
      %986 = vset.pattern.permute.xlu0 0
      %987 = vperm.xlu0 %986, %v977
      %v988 = vpop.permute.xlu0 %987
      %991 = vset.pattern.permute.xlu0 0
      %992 = vperm.xlu0 %991, %v978
      %v993 = vpop.permute.xlu0 %992
      %996 = vset.pattern.permute.xlu0 0
      %997 = vperm.xlu0 %996, %v979
      %v998 = vpop.permute.xlu0 %997
      %1001 = vset.pattern.permute.xlu0 0
      %1002 = vperm.xlu0 %1001, %v980
      %v1003 = vpop.permute.xlu0 %1002
      %1006 = vset.pattern.permute.xlu0 0
      %1007 = vperm.xlu0 %1006, %v981
      %v1008 = vpop.permute.xlu0 %1007
      %1011 = vset.pattern.permute.xlu0 0
      %1012 = vperm.xlu0 %1011, %v982
      %v1013 = vpop.permute.xlu0 %1012
      %1016 = vset.pattern.permute.xlu0 0
      %1017 = vperm.xlu0 %1016, %v983
      %v1018 = vpop.permute.xlu0 %1017
      %1021 = vset.pattern.permute.xlu0 0
      %1022 = vperm.xlu0 %1021, %v984
      %v1023 = vpop.permute.xlu0 %1022
      %v1026 = vsel %vm559, %v969, 0
      %v1029 = vsel %vm559, %v970, 0
      %v1032 = vsel %vm559, %v971, 0
      %v1035 = vsel %vm559, %v972, 0
      %v1038 = vsel %vm559, %v973, 0
      %v1041 = vsel %vm559, %v974, 0
      %v1044 = vsel %vm559, %v975, 0
      %v1047 = vsel %vm559, %v976, 0
      %1049 = vmatpush.msra.mxu0 0.0
      %1050 = vmatpush.msra.mxu0 0.0
      %1051 = vmatpush.msra.mxu0 0.0
      %1052 = vmatpush.msra.mxu0 0.0
      %1053 = vmatpush.msra.mxu0 0.0
      %1054 = vmatpush.msra.mxu0 0.0
      %1055 = vmatpush.msra.mxu0 0.0
      %1056 = vmatpush.msra.mxu0 0.0
      %1057 = vmatpush.msra.mxu0 %v744
      %1058 = vmatpush.msra.mxu0 %v743
      %1059 = vmatpush.msra.mxu0 %v968
      %1060 = vmatpush.msra.mxu0 %v967
      %1061 = vmatpush.msra.mxu0 %v893
      %1062 = vmatpush.msra.mxu0 %v892
      %1063 = vmatpush.msra.mxu0 %v818
      %1064 = vmatpush.msra.mxu0 %v817
      %1065 = vmatmul.f32.gmra.mxu0 %v1026
      %v1066 = vpop.f32.mrf.mxu0
      %v1067 = vadd.f32 %v988, %v1066
      %1068 = vmatmul.f32.gmra.mxu0 %v1029
      %v1069 = vpop.f32.mrf.mxu0
      %v1070 = vadd.f32 %v993, %v1069
      %1071 = vmatmul.f32.gmra.mxu0 %v1032
      %v1072 = vpop.f32.mrf.mxu0
      %v1073 = vadd.f32 %v998, %v1072
      %1074 = vmatmul.f32.gmra.mxu0 %v1035
      %v1075 = vpop.f32.mrf.mxu0
      %v1076 = vadd.f32 %v1003, %v1075
      %1077 = vmatmul.f32.gmra.mxu0 %v1038
      %v1078 = vpop.f32.mrf.mxu0
      %v1079 = vadd.f32 %v1008, %v1078
      %1080 = vmatmul.f32.gmra.mxu0 %v1041
      %v1081 = vpop.f32.mrf.mxu0
      %v1082 = vadd.f32 %v1013, %v1081
      %1083 = vmatmul.f32.gmra.mxu0 %v1044
      %v1084 = vpop.f32.mrf.mxu0
      %v1085 = vadd.f32 %v1018, %v1084
      %1086 = vmatmul.f32.gmra.mxu0 %v1047
      %v1087 = vpop.f32.mrf.mxu0
      %v1088 = vadd.f32 %v1023, %v1087
      %1089 = vdwg.mxu0
      %v1090 = vmax.f32 %v1067, 0.0
      %v1091 = vmax.f32 %v1070, 0.0
      %v1092 = vmax.f32 %v1073, 0.0
      %v1093 = vmax.f32 %v1076, 0.0
      %v1094 = vmax.f32 %v1079, 0.0
      %v1095 = vmax.f32 %v1082, 0.0
      %v1096 = vmax.f32 %v1085, 0.0
      %v1097 = vmax.f32 %v1088, 0.0
      %v1098 = vld [vmem:[%s9] sm:$0xff]
      %v1099 = vld [vmem:[%s9 + $0x8] sm:$0xff]
      %v1100 = vld [vmem:[%s9 + $0x10] sm:$0xff]
      %v1101 = vld [vmem:[%s9 + $0x18] sm:$0xff]
      %v1102 = vld [vmem:[%s9 + $0x20] sm:$0xff]
      %v1103 = vld [vmem:[%s9 + $0x28] sm:$0xff]
      %v1104 = vld [vmem:[%s9 + $0x30] sm:$0xff]
      %v1105 = vld [vmem:[%s9 + $0x38] sm:$0xff]
      %1107 = vset.pattern.permute.xlu0 0
      %1108 = vperm.xlu0 %1107, %v1098
      %v1109 = vpop.permute.xlu0 %1108
      %1112 = vset.pattern.permute.xlu0 0
      %1113 = vperm.xlu0 %1112, %v1099
      %v1114 = vpop.permute.xlu0 %1113
      %1117 = vset.pattern.permute.xlu0 0
      %1118 = vperm.xlu0 %1117, %v1100
      %v1119 = vpop.permute.xlu0 %1118
      %1122 = vset.pattern.permute.xlu0 0
      %1123 = vperm.xlu0 %1122, %v1101
      %v1124 = vpop.permute.xlu0 %1123
      %1127 = vset.pattern.permute.xlu0 0
      %1128 = vperm.xlu0 %1127, %v1102
      %v1129 = vpop.permute.xlu0 %1128
      %1132 = vset.pattern.permute.xlu0 0
      %1133 = vperm.xlu0 %1132, %v1103
      %v1134 = vpop.permute.xlu0 %1133
      %1137 = vset.pattern.permute.xlu0 0
      %1138 = vperm.xlu0 %1137, %v1104
      %v1139 = vpop.permute.xlu0 %1138
      %1142 = vset.pattern.permute.xlu0 0
      %1143 = vperm.xlu0 %1142, %v1105
      %v1144 = vpop.permute.xlu0 %1143
      %v1146 = vmul.f32 %v1090, %v1109
      %v1147 = vmul.f32 %v1091, %v1114
      %v1148 = vmul.f32 %v1092, %v1119
      %v1149 = vmul.f32 %v1093, %v1124
      %v1150 = vmul.f32 %v1094, %v1129
      %v1151 = vmul.f32 %v1095, %v1134
      %v1152 = vmul.f32 %v1096, %v1139
      %v1153 = vmul.f32 %v1097, %v1144
      %v1154 = vld [vmem:[%s10] sm:$0xff]
      %v1155 = vld [vmem:[%s10 + $0x8] sm:$0xff]
      %v1156 = vld [vmem:[%s10 + $0x10] sm:$0xff]
      %v1157 = vld [vmem:[%s10 + $0x18] sm:$0xff]
      %v1158 = vld [vmem:[%s10 + $0x20] sm:$0xff]
      %v1159 = vld [vmem:[%s10 + $0x28] sm:$0xff]
      %v1160 = vld [vmem:[%s10 + $0x30] sm:$0xff]
      %v1161 = vld [vmem:[%s10 + $0x38] sm:$0xff]
      %1163 = vset.pattern.permute.xlu0 0
      %1164 = vperm.xlu0 %1163, %v1154
      %v1165 = vpop.permute.xlu0 %1164
      %1168 = vset.pattern.permute.xlu0 0
      %1169 = vperm.xlu0 %1168, %v1155
      %v1170 = vpop.permute.xlu0 %1169
      %1173 = vset.pattern.permute.xlu0 0
      %1174 = vperm.xlu0 %1173, %v1156
      %v1175 = vpop.permute.xlu0 %1174
      %1178 = vset.pattern.permute.xlu0 0
      %1179 = vperm.xlu0 %1178, %v1157
      %v1180 = vpop.permute.xlu0 %1179
      %1183 = vset.pattern.permute.xlu0 0
      %1184 = vperm.xlu0 %1183, %v1158
      %v1185 = vpop.permute.xlu0 %1184
      %1188 = vset.pattern.permute.xlu0 0
      %1189 = vperm.xlu0 %1188, %v1159
      %v1190 = vpop.permute.xlu0 %1189
      %1193 = vset.pattern.permute.xlu0 0
      %1194 = vperm.xlu0 %1193, %v1160
      %v1195 = vpop.permute.xlu0 %1194
      %1198 = vset.pattern.permute.xlu0 0
      %1199 = vperm.xlu0 %1198, %v1161
      %v1200 = vpop.permute.xlu0 %1199
      %v1202 = vadd.f32 %v1146, %v1165
      %v1203 = vadd.f32 %v1147, %v1170
      %v1204 = vadd.f32 %v1148, %v1175
      %v1205 = vadd.f32 %v1149, %v1180
      %v1206 = vadd.f32 %v1150, %v1185
      %v1207 = vadd.f32 %v1151, %v1190
      %v1208 = vadd.f32 %v1152, %v1195
      %v1209 = vadd.f32 %v1153, %v1200
      %vm1210 = vcmask 130048
      %v1211 = vsel %vm1210, %v1202, 0.0
      %1212 = vadd.xlane.f32.xlu0 %v1211
      %v1213 = vpop.xlane.xlu0 %1212
      %v1214 = vsel %vm1210, %v1203, 0.0
      %1215 = vadd.xlane.f32.xlu0 %v1214
      %v1216 = vpop.xlane.xlu0 %1215
      %v1217 = vsel %vm1210, %v1204, 0.0
      %1218 = vadd.xlane.f32.xlu0 %v1217
      %v1219 = vpop.xlane.xlu0 %1218
      %v1220 = vsel %vm1210, %v1205, 0.0
      %1221 = vadd.xlane.f32.xlu0 %v1220
      %v1222 = vpop.xlane.xlu0 %1221
      %v1223 = vsel %vm1210, %v1206, 0.0
      %1224 = vadd.xlane.f32.xlu0 %v1223
      %v1225 = vpop.xlane.xlu0 %1224
      %v1226 = vsel %vm1210, %v1207, 0.0
      %1227 = vadd.xlane.f32.xlu0 %v1226
      %v1228 = vpop.xlane.xlu0 %1227
      %v1229 = vsel %vm1210, %v1208, 0.0
      %1230 = vadd.xlane.f32.xlu0 %v1229
      %v1231 = vpop.xlane.xlu0 %1230
      %v1232 = vsel %vm1210, %v1209, 0.0
      %1233 = vadd.xlane.f32.xlu0 %v1232
      %v1234 = vpop.xlane.xlu0 %1233
      %v1235 = vrcp.pop 16.0
      %v1236 = vmul.f32 16.0, %v1235
      %v1237 = vsub.f32 1.0, %v1236
      %v1238 = vmul.f32 %v1235, %v1237
      %v1239 = vadd.f32 %v1235, %v1238
      %vm1240 = vweird.f32 %v1235
      %v1241 = vsel %vm1240, %v1235, %v1239
      %v1242 = vmul.f32 %v1213, %v1241
      %v1243 = vmul.f32 %v1216, %v1241
      %v1244 = vmul.f32 %v1219, %v1241
      %v1245 = vmul.f32 %v1222, %v1241
      %v1246 = vmul.f32 %v1225, %v1241
      %v1247 = vmul.f32 %v1228, %v1241
      %v1248 = vmul.f32 %v1231, %v1241
      %v1249 = vmul.f32 %v1234, %v1241
      %v1250 = vld [vmem:[%s11] sm:$0xff]
      %v1251 = vld [vmem:[%s11 + $0x8] sm:$0xff]
      %v1252 = vld [vmem:[%s12] sm:$0xff]
      %v1253 = vld [vmem:[%s12 + $0x8] sm:$0xff]
      %v1255 = vsel %vm559, %v1250, 0
      %v1258 = vsel %vm559, %v1251, 0
      %1260 = vmatpush.msra.mxu0 0.0
      %1261 = vmatpush.msra.mxu0 0.0
      %1262 = vmatpush.msra.mxu0 0.0
      %1263 = vmatpush.msra.mxu0 0.0
      %1264 = vmatpush.msra.mxu0 0.0
      %1265 = vmatpush.msra.mxu0 0.0
      %1266 = vmatpush.msra.mxu0 0.0
      %1267 = vmatpush.msra.mxu0 0.0
      %1268 = vmatpush.msra.mxu0 %v1249
      %1269 = vmatpush.msra.mxu0 %v1248
      %1270 = vmatpush.msra.mxu0 %v1247
      %1271 = vmatpush.msra.mxu0 %v1246
      %1272 = vmatpush.msra.mxu0 %v1245
      %1273 = vmatpush.msra.mxu0 %v1244
      %1274 = vmatpush.msra.mxu0 %v1243
      %1275 = vmatpush.msra.mxu0 %v1242
      %1276 = vmatmul.f32.gmra.mxu0 %v1255
      %v1277 = vpop.f32.mrf.mxu0
      %v1278 = vadd.f32 %v1252, %v1277
      %1279 = vmatmul.f32.gmra.mxu0 %v1258
      %v1280 = vpop.f32.mrf.mxu0
      %v1281 = vadd.f32 %v1253, %v1280
      %1282 = vdwg.mxu0
      %v1283 = vmax.f32 %v1278, 0.0
      %v1284 = vmax.f32 %v1281, 0.0
      %v1285 = vld [vmem:[%s13] sm:$0xff]
      %v1286 = vld [vmem:[%s13 + $0x8] sm:$0xff]
      %v1287 = vld [vmem:[%s13 + $0x10] sm:$0xff]
      %v1288 = vld [vmem:[%s13 + $0x18] sm:$0xff]
      %v1289 = vld [vmem:[%s13 + $0x20] sm:$0xff]
      %v1290 = vld [vmem:[%s13 + $0x28] sm:$0xff]
      %v1291 = vld [vmem:[%s13 + $0x30] sm:$0xff]
      %v1292 = vld [vmem:[%s13 + $0x38] sm:$0xff]
      %v1293 = vld [vmem:[%s14] sm:$0xff]
      %v1294 = vld [vmem:[%s14 + $0x8] sm:$0xff]
      %v1295 = vld [vmem:[%s14 + $0x10] sm:$0xff]
      %v1296 = vld [vmem:[%s14 + $0x18] sm:$0xff]
      %v1297 = vld [vmem:[%s14 + $0x20] sm:$0xff]
      %v1298 = vld [vmem:[%s14 + $0x28] sm:$0xff]
      %v1299 = vld [vmem:[%s14 + $0x30] sm:$0xff]
      %v1300 = vld [vmem:[%s14 + $0x38] sm:$0xff]
      %v1302 = vsel %vm1210, %v1285, 0
      %v1305 = vsel %vm1210, %v1286, 0
      %v1308 = vsel %vm1210, %v1287, 0
      %v1311 = vsel %vm1210, %v1288, 0
      %v1314 = vsel %vm1210, %v1289, 0
      %v1317 = vsel %vm1210, %v1290, 0
      %v1320 = vsel %vm1210, %v1291, 0
      %v1323 = vsel %vm1210, %v1292, 0
      %1325 = vmatpush.msra.mxu0 0.0
      %1326 = vmatpush.msra.mxu0 0.0
      %1327 = vmatpush.msra.mxu0 0.0
      %1328 = vmatpush.msra.mxu0 0.0
      %1329 = vmatpush.msra.mxu0 0.0
      %1330 = vmatpush.msra.mxu0 0.0
      %1331 = vmatpush.msra.mxu0 0.0
      %1332 = vmatpush.msra.mxu0 0.0
      %1333 = vmatpush.msra.mxu0 0.0
      %1334 = vmatpush.msra.mxu0 0.0
      %1335 = vmatpush.msra.mxu0 0.0
      %1336 = vmatpush.msra.mxu0 0.0
      %1337 = vmatpush.msra.mxu0 0.0
      %1338 = vmatpush.msra.mxu0 0.0
      %1339 = vmatpush.msra.mxu0 %v1284
      %1340 = vmatpush.msra.mxu0 %v1283
      %1341 = vmatmul.f32.gmra.mxu0 %v1302
      %v1342 = vpop.f32.mrf.mxu0
      %v1343 = vadd.f32 %v1293, %v1342
      %1344 = vmatmul.f32.gmra.mxu0 %v1305
      %v1345 = vpop.f32.mrf.mxu0
      %v1346 = vadd.f32 %v1294, %v1345
      %1347 = vmatmul.f32.gmra.mxu0 %v1308
      %v1348 = vpop.f32.mrf.mxu0
      %v1349 = vadd.f32 %v1295, %v1348
      %1350 = vmatmul.f32.gmra.mxu0 %v1311
      %v1351 = vpop.f32.mrf.mxu0
      %v1352 = vadd.f32 %v1296, %v1351
      %1353 = vmatmul.f32.gmra.mxu0 %v1314
      %v1354 = vpop.f32.mrf.mxu0
      %v1355 = vadd.f32 %v1297, %v1354
      %1356 = vmatmul.f32.gmra.mxu0 %v1317
      %v1357 = vpop.f32.mrf.mxu0
      %v1358 = vadd.f32 %v1298, %v1357
      %1359 = vmatmul.f32.gmra.mxu0 %v1320
      %v1360 = vpop.f32.mrf.mxu0
      %v1361 = vadd.f32 %v1299, %v1360
      %1362 = vmatmul.f32.gmra.mxu0 %v1323
      %v1363 = vpop.f32.mrf.mxu0
      %v1364 = vadd.f32 %v1300, %v1363
      %1365 = vdwg.mxu0
      %v1366 = vsub.f32 0.0, %v1343
      %v1367 = vsub.f32 0.0, %v1346
      %v1368 = vsub.f32 0.0, %v1349
      %v1369 = vsub.f32 0.0, %v1352
      %v1370 = vsub.f32 0.0, %v1355
      %v1371 = vsub.f32 0.0, %v1358
      %v1372 = vsub.f32 0.0, %v1361
      %v1373 = vsub.f32 0.0, %v1364
      %v1374 = vmul.f32 %v1366, 1.442695
      %v1375 = vpow.pop %v1374
      %v1376 = vmul.f32 %v1367, 1.442695
      %v1377 = vpow.pop %v1376
      %v1378 = vmul.f32 %v1368, 1.442695
      %v1379 = vpow.pop %v1378
      %v1380 = vmul.f32 %v1369, 1.442695
      %v1381 = vpow.pop %v1380
      %v1382 = vmul.f32 %v1370, 1.442695
      %v1383 = vpow.pop %v1382
      %v1384 = vmul.f32 %v1371, 1.442695
      %v1385 = vpow.pop %v1384
      %v1386 = vmul.f32 %v1372, 1.442695
      %v1387 = vpow.pop %v1386
      %v1388 = vmul.f32 %v1373, 1.442695
      %v1389 = vpow.pop %v1388
      %v1390 = vadd.f32 %v1375, 1.0
      %v1391 = vadd.f32 %v1377, 1.0
      %v1392 = vadd.f32 %v1379, 1.0
      %v1393 = vadd.f32 %v1381, 1.0
      %v1394 = vadd.f32 %v1383, 1.0
      %v1395 = vadd.f32 %v1385, 1.0
      %v1396 = vadd.f32 %v1387, 1.0
      %v1397 = vadd.f32 %v1389, 1.0
      %v1398 = vrcp.pop %v1390
      %v1399 = vmul.f32 %v1390, %v1398
      %v1400 = vsub.f32 1.0, %v1399
      %v1401 = vmul.f32 %v1398, %v1400
      %v1402 = vadd.f32 %v1398, %v1401
      %vm1403 = vweird.f32 %v1390
      %vm1404 = vweird.f32 %v1398
      %vm1405 = vmor %vm1403, %vm1404
      %v1406 = vsel %vm1405, %v1398, %v1402
      %v1407 = vand.u32 2147483647, %v1390
      %vm1408 = vcmp.eq.f32.partialorder %v1407, 8.507059e+37
      %v1409 = vand.u32 %v1390, 2147483648
      %v1410 = vor.u32 1.1754944e-38, %v1409
      %v1411 = vsel %vm1408, %v1410, %v1406
      %v1412 = vmul.f32 1.0, %v1411
      %v1413 = vrcp.pop %v1391
      %v1414 = vmul.f32 %v1391, %v1413
      %v1415 = vsub.f32 1.0, %v1414
      %v1416 = vmul.f32 %v1413, %v1415
      %v1417 = vadd.f32 %v1413, %v1416
      %vm1418 = vweird.f32 %v1391
      %vm1419 = vweird.f32 %v1413
      %vm1420 = vmor %vm1418, %vm1419
      %v1421 = vsel %vm1420, %v1413, %v1417
      %v1422 = vand.u32 2147483647, %v1391
      %vm1423 = vcmp.eq.f32.partialorder %v1422, 8.507059e+37
      %v1424 = vand.u32 %v1391, 2147483648
      %v1425 = vor.u32 1.1754944e-38, %v1424
      %v1426 = vsel %vm1423, %v1425, %v1421
      %v1427 = vmul.f32 1.0, %v1426
      %v1428 = vrcp.pop %v1392
      %v1429 = vmul.f32 %v1392, %v1428
      %v1430 = vsub.f32 1.0, %v1429
      %v1431 = vmul.f32 %v1428, %v1430
      %v1432 = vadd.f32 %v1428, %v1431
      %vm1433 = vweird.f32 %v1392
      %vm1434 = vweird.f32 %v1428
      %vm1435 = vmor %vm1433, %vm1434
      %v1436 = vsel %vm1435, %v1428, %v1432
      %v1437 = vand.u32 2147483647, %v1392
      %vm1438 = vcmp.eq.f32.partialorder %v1437, 8.507059e+37
      %v1439 = vand.u32 %v1392, 2147483648
      %v1440 = vor.u32 1.1754944e-38, %v1439
      %v1441 = vsel %vm1438, %v1440, %v1436
      %v1442 = vmul.f32 1.0, %v1441
      %v1443 = vrcp.pop %v1393
      %v1444 = vmul.f32 %v1393, %v1443
      %v1445 = vsub.f32 1.0, %v1444
      %v1446 = vmul.f32 %v1443, %v1445
      %v1447 = vadd.f32 %v1443, %v1446
      %vm1448 = vweird.f32 %v1393
      %vm1449 = vweird.f32 %v1443
      %vm1450 = vmor %vm1448, %vm1449
      %v1451 = vsel %vm1450, %v1443, %v1447
      %v1452 = vand.u32 2147483647, %v1393
      %vm1453 = vcmp.eq.f32.partialorder %v1452, 8.507059e+37
      %v1454 = vand.u32 %v1393, 2147483648
      %v1455 = vor.u32 1.1754944e-38, %v1454
      %v1456 = vsel %vm1453, %v1455, %v1451
      %v1457 = vmul.f32 1.0, %v1456
      %v1458 = vrcp.pop %v1394
      %v1459 = vmul.f32 %v1394, %v1458
      %v1460 = vsub.f32 1.0, %v1459
      %v1461 = vmul.f32 %v1458, %v1460
      %v1462 = vadd.f32 %v1458, %v1461
      %vm1463 = vweird.f32 %v1394
      %vm1464 = vweird.f32 %v1458
      %vm1465 = vmor %vm1463, %vm1464
      %v1466 = vsel %vm1465, %v1458, %v1462
      %v1467 = vand.u32 2147483647, %v1394
      %vm1468 = vcmp.eq.f32.partialorder %v1467, 8.507059e+37
      %v1469 = vand.u32 %v1394, 2147483648
      %v1470 = vor.u32 1.1754944e-38, %v1469
      %v1471 = vsel %vm1468, %v1470, %v1466
      %v1472 = vmul.f32 1.0, %v1471
      %v1473 = vrcp.pop %v1395
      %v1474 = vmul.f32 %v1395, %v1473
      %v1475 = vsub.f32 1.0, %v1474
      %v1476 = vmul.f32 %v1473, %v1475
      %v1477 = vadd.f32 %v1473, %v1476
      %vm1478 = vweird.f32 %v1395
      %vm1479 = vweird.f32 %v1473
      %vm1480 = vmor %vm1478, %vm1479
      %v1481 = vsel %vm1480, %v1473, %v1477
      %v1482 = vand.u32 2147483647, %v1395
      %vm1483 = vcmp.eq.f32.partialorder %v1482, 8.507059e+37
      %v1484 = vand.u32 %v1395, 2147483648
      %v1485 = vor.u32 1.1754944e-38, %v1484
      %v1486 = vsel %vm1483, %v1485, %v1481
      %v1487 = vmul.f32 1.0, %v1486
      %v1488 = vrcp.pop %v1396
      %v1489 = vmul.f32 %v1396, %v1488
      %v1490 = vsub.f32 1.0, %v1489
      %v1491 = vmul.f32 %v1488, %v1490
      %v1492 = vadd.f32 %v1488, %v1491
      %vm1493 = vweird.f32 %v1396
      %vm1494 = vweird.f32 %v1488
      %vm1495 = vmor %vm1493, %vm1494
      %v1496 = vsel %vm1495, %v1488, %v1492
      %v1497 = vand.u32 2147483647, %v1396
      %vm1498 = vcmp.eq.f32.partialorder %v1497, 8.507059e+37
      %v1499 = vand.u32 %v1396, 2147483648
      %v1500 = vor.u32 1.1754944e-38, %v1499
      %v1501 = vsel %vm1498, %v1500, %v1496
      %v1502 = vmul.f32 1.0, %v1501
      %v1503 = vrcp.pop %v1397
      %v1504 = vmul.f32 %v1397, %v1503
      %v1505 = vsub.f32 1.0, %v1504
      %v1506 = vmul.f32 %v1503, %v1505
      %v1507 = vadd.f32 %v1503, %v1506
      %vm1508 = vweird.f32 %v1397
      %vm1509 = vweird.f32 %v1503
      %vm1510 = vmor %vm1508, %vm1509
      %v1511 = vsel %vm1510, %v1503, %v1507
      %v1512 = vand.u32 2147483647, %v1397
      %vm1513 = vcmp.eq.f32.partialorder %v1512, 8.507059e+37
      %v1514 = vand.u32 %v1397, 2147483648
      %v1515 = vor.u32 1.1754944e-38, %v1514
      %v1516 = vsel %vm1513, %v1515, %v1511
      %v1517 = vmul.f32 1.0, %v1516
      %1519 = vset.pattern.permute.xlu0 0
      %1520 = vperm.xlu0 %1519, %v1412
      %v1521 = vpop.permute.xlu0 %1520
      %1524 = vset.pattern.permute.xlu0 0
      %1525 = vperm.xlu0 %1524, %v1427
      %v1526 = vpop.permute.xlu0 %1525
      %1529 = vset.pattern.permute.xlu0 0
      %1530 = vperm.xlu0 %1529, %v1442
      %v1531 = vpop.permute.xlu0 %1530
      %1534 = vset.pattern.permute.xlu0 0
      %1535 = vperm.xlu0 %1534, %v1457
      %v1536 = vpop.permute.xlu0 %1535
      %1539 = vset.pattern.permute.xlu0 0
      %1540 = vperm.xlu0 %1539, %v1472
      %v1541 = vpop.permute.xlu0 %1540
      %1544 = vset.pattern.permute.xlu0 0
      %1545 = vperm.xlu0 %1544, %v1487
      %v1546 = vpop.permute.xlu0 %1545
      %1549 = vset.pattern.permute.xlu0 0
      %1550 = vperm.xlu0 %1549, %v1502
      %v1551 = vpop.permute.xlu0 %1550
      %1554 = vset.pattern.permute.xlu0 0
      %1555 = vperm.xlu0 %1554, %v1517
      %v1556 = vpop.permute.xlu0 %1555
      %v1558 = vmul.f32 %v1202, %v1521
      %v1559 = vmul.f32 %v1203, %v1526
      %v1560 = vmul.f32 %v1204, %v1531
      %v1561 = vmul.f32 %v1205, %v1536
      %v1562 = vmul.f32 %v1206, %v1541
      %v1563 = vmul.f32 %v1207, %v1546
      %v1564 = vmul.f32 %v1208, %v1551
      %v1565 = vmul.f32 %v1209, %v1556
      %v1566 = vadd.f32 %v495, %v1558
      %v1567 = vadd.f32 %v496, %v1559
      %v1568 = vadd.f32 %v497, %v1560
      %v1569 = vadd.f32 %v498, %v1561
      %v1570 = vadd.f32 %v499, %v1562
      %v1571 = vadd.f32 %v500, %v1563
      %v1572 = vadd.f32 %v501, %v1564
      %v1573 = vadd.f32 %v502, %v1565
      %1574 = vst.msk [vmem:[%s494] sm:$0xff] %vm1210, %v1566
      %1575 = vst.msk [vmem:[%s494 + $0x8] sm:$0xff] %vm1210, %v1567
      %1576 = vst.msk [vmem:[%s494 + $0x10] sm:$0xff] %vm1210, %v1568
      %1577 = vst.msk [vmem:[%s494 + $0x18] sm:$0xff] %vm1210, %v1569
      %1578 = vst.msk [vmem:[%s494 + $0x20] sm:$0xff] %vm1210, %v1570
      %1579 = vst.msk [vmem:[%s494 + $0x28] sm:$0xff] %vm1210, %v1571
      %1580 = vst.msk [vmem:[%s494 + $0x30] sm:$0xff] %vm1210, %v1572
      %1581 = vst.msk [vmem:[%s494 + $0x38] sm:$0xff] %vm1210, %v1573
      %p1582 = scmp.lt.s32.totalorder %s26, 1
      %s1583 = scalar_select %p1582, %s26, 1
      %s1584 = smul.addr %s1583, 8
      %s1585 = smul.addr %s1584, 8
      %s1586 = scalar_lea.vmem %s15, %s1585
      // Predicated region
      $region81: #{tpu_custom_call.1} parent=79 // pred_check
        %p1587 = pneg %p364
      $region82: #{tpu_custom_call.1} parent=79 // pred_check_branch
        %1589 = sbr.rel (%p1587) target = $region84
      $region83: #{tpu_custom_call.1} parent=79 // pred_region
        _
      $region84: #{tpu_custom_call.1} parent=79 // pred_fallthru
        _
    $region80: #{tpu_custom_call.1} parent=5 // pred_fallthru
      _
    %p1590 = scmp.le.s32.totalorder 2, %s21
    // Predicated region
    $region85: #{tpu_custom_call.1} parent=5 // pred_check
      %p1591 = pneg %p1590
    $region86: #{tpu_custom_call.1} parent=5 // pred_check_branch
      %1593 = sbr.rel (%p1591) target = $region88
    $region87: #{tpu_custom_call.1} parent=5 // pred_region
      %s1594 = ssub.s32 %s21, 2
      // Predicated region
      $region89: #{tpu_custom_call.1} parent=87 // pred_check
        %p1595 = pneg %p370
      $region90: #{tpu_custom_call.1} parent=87 // pred_check_branch
        %1597 = sbr.rel (%p1595) target = $region92
      $region91: #{tpu_custom_call.1} parent=87 // pred_region
        %p1598 = scmp.lt.s32.totalorder %s27, 1
        %s1599 = scalar_select %p1598, %s27, 1
        %s1600 = smul.addr %s1599, 8
        %s1601 = smul.addr %s1600, 8
        %s1602 = scalar_lea.vmem %s15, %s1601
      $region92: #{tpu_custom_call.1} parent=87 // pred_fallthru
        _
    $region88: #{tpu_custom_call.1} parent=5 // pred_fallthru
      _
  $region6: #{tpu_custom_call.1} parent=0 // loop_footer
    %s25 = sadd.s32 1, %s21
  $region7: #{tpu_custom_call.1} parent=0 // loop_footer_branch
    %20 = sbr.rel target = $region3
  $region8: #{tpu_custom_call.1} parent=0 // loop_exit
    _

</llo_original>
